<compile_context>
chip_gen: v6e
topology: v6e:2x2x1
jax: 0.10.0
libtpu: 0.0.40
codegen_flags: <defaults>
</compile_context>

<pallas_src>
import jax
import jax.numpy as jnp
from jax import lax
from jax.experimental import pallas as pl
from jax.experimental.pallas import tpu as pltpu

LANE = 128


def _round_up(x, m):
    return ((x + m - 1) // m) * m


# ----------------------------------------------------------------------------
# Feature-extractor CNN kernel: im2col GEMM + bias + ReLU + global avg pool.
# TODO(synk): FeatureExtractor(p.extractor) is defined outside the given
#             source; a synthetic conv->ReLU->GAP extractor producing
#             p.input_size features per frame stands in for it.
# ----------------------------------------------------------------------------
def _conv_gemm_kernel(p_ref, w_ref, b_ref, out_ref):
    # p_ref: (Fblk, HW, Kp) bf16   w_ref: (Kp, Op) bf16   b_ref: (1, Op) f32
    # out_ref: (Fblk, Op) f32
    fblk, hw, kp = p_ref.shape
    op = w_ref.shape[1]

    patches = p_ref[...].reshape(fblk * hw, kp)          # merge major dims
    acc = jnp.dot(patches, w_ref[...],
                  preferred_element_type=jnp.float32)    # one MXU GEMM
    acc = jnp.maximum(acc + b_ref[...], 0.0)             # bias + ReLU (f32)
    out_ref[...] = jnp.mean(acc.reshape(fblk, hw, op), axis=1)   # GAP


def conv_features(x_nchw, w, b, *, frame_block=8):
    """x_nchw: (N, C, H, W). Returns lane-padded features (N, Op) f32."""
    N, C, H, W = x_nchw.shape
    KH, KW, _, O = w.shape
    k_real = KH * KW * C
    kp = _round_up(k_real, LANE)
    op = _round_up(O, LANE)
    n_pad = _round_up(max(N, frame_block), frame_block)

    # ---- wrapper glue: NHWC + zero-pad + im2col (9 taps folded into K) ----
    x = jnp.transpose(x_nchw, (0, 2, 3, 1))                       # NCHW->NHWC
    xp = jnp.pad(x, ((0, 0), (1, 1), (1, 1), (0, 0)))             # padding=1
    taps = [xp[:, kh:kh + H, kw:kw + W, :]
            for kh in range(KH) for kw in range(KW)]              # (kh,kw,c)
    patches = jnp.concatenate(taps, axis=-1).reshape(N, H * W, k_real)
    patches = jnp.pad(patches, ((0, n_pad - N), (0, 0), (0, kp - k_real)))
    patches = patches.astype(jnp.bfloat16)

    w_p = jnp.pad(w.reshape(k_real, O),
                  ((0, kp - k_real), (0, op - O))).astype(jnp.bfloat16)
    b_p = jnp.pad(b, (0, op - O)).reshape(1, op).astype(jnp.float32)

    grid = (n_pad // frame_block,)
    feats = pl.pallas_call(
        _conv_gemm_kernel,
        out_shape=jax.ShapeDtypeStruct((n_pad, op), jnp.float32),
        grid=grid,
        in_specs=[
            pl.BlockSpec((frame_block, H * W, kp), lambda i: (i, 0, 0)),
            pl.BlockSpec((kp, op), lambda i: (0, 0)),
            pl.BlockSpec((1, op), lambda i: (0, 0)),
        ],
        out_specs=pl.BlockSpec((frame_block, op), lambda i: (i, 0)),
        compiler_params=pltpu.CompilerParams(
            dimension_semantics=("parallel",),
            vmem_limit_bytes=48 * 1024 * 1024),
        cost_estimate=pl.CostEstimate(
            flops=2 * n_pad * H * W * kp * op,
            transcendentals=0,
            bytes_accessed=patches.size * 2 + w_p.size * 2 + n_pad * op * 4),
    )(patches, w_p, b_p)
    return feats[:N]           # (N, Op) f32, zeros beyond the real O features


# ----------------------------------------------------------------------------
# Single GRU layer, time-major, gridded over time chunks.
# PyTorch gate order (r, z, n); zero initial hidden.
# ----------------------------------------------------------------------------
def _gru_chunk_kernel(x_ref, wih_ref, whh_ref, bih_ref, bhh_ref, y_ref, hn_ref):
    # x_ref: (tS, B, Ip) bf16    wih: (Ip, 3Hp) bf16    whh: (Hp, 3Hp) bf16
    # bih/bhh: (1, 3Hp) f32      y_ref: (tS, B, Hp) bf16
    # hn_ref: (B, Hp) f32 — resident across the time-chunk grid (carried state)
    t_chunk, B, _ = x_ref.shape
    Hp = whh_ref.shape[0]

    @pl.when(pl.program_id(0) == 0)
    def _():
        hn_ref[...] = jnp.zeros_like(hn_ref)              # h_0 = 0

    # Hoisted weight/bias loads + broadcasts (never re-issued in the loop).
    wih = wih_ref[...]
    whh = whh_ref[...]
    bih = bih_ref[...]
    bhh = jnp.broadcast_to(bhh_ref[...], (B, 3 * Hp))

    # Input projection for the whole chunk as one big GEMM, off the
    # sequential critical path.
    x = x_ref[...].reshape(t_chunk * B, x_ref.shape[2])
    gi_all = (jnp.dot(x, wih, preferred_element_type=jnp.float32)
              + bih).reshape(t_chunk, B, 3 * Hp)

    h = hn_ref[...]                                       # carried hidden (f32)
    # Fully (statically) unrolled recurrence: only h @ Whh per step; gate
    # slices are lane-aligned (Hp == 128).
    for t in range(t_chunk):
        gi = gi_all[t]
        gh = jnp.dot(h.astype(whh.dtype), whh,
                     preferred_element_type=jnp.float32) + bhh
        r = jax.nn.sigmoid(gi[:, :Hp] + gh[:, :Hp])
        z = jax.nn.sigmoid(gi[:, Hp:2 * Hp] + gh[:, Hp:2 * Hp])
        n = jnp.tanh(gi[:, 2 * Hp:] + r * gh[:, 2 * Hp:])
        h = (1.0 - z) * n + z * h
        y_ref[t] = h.astype(y_ref.dtype)                  # lane-dense store
    hn_ref[...] = h


def gru_layer_tm(x_tm, wih_p, whh_p, bih_p, bhh_p, *, t_chunk=4):
    """x_tm: (S, B, Ip) bf16, time-major. Returns (y_tm bf16, h_n f32)."""
    S, B, Ip = x_tm.shape
    Hp = whh_p.shape[0]
    if S % t_chunk != 0:
        t_chunk = S
    grid = (S // t_chunk,)

    y_tm, h_n = pl.pallas_call(
        _gru_chunk_kernel,
        out_shape=(jax.ShapeDtypeStruct((S, B, Hp), jnp.bfloat16),
                   jax.ShapeDtypeStruct((B, Hp), jnp.float32)),
        grid=grid,
        in_specs=[
            pl.BlockSpec((t_chunk, B, Ip), lambda i: (i, 0, 0)),
            pl.BlockSpec((Ip, 3 * Hp), lambda i: (0, 0)),
            pl.BlockSpec((Hp, 3 * Hp), lambda i: (0, 0)),
            pl.BlockSpec((1, 3 * Hp), lambda i: (0, 0)),
            pl.BlockSpec((1, 3 * Hp), lambda i: (0, 0)),
        ],
        out_specs=(pl.BlockSpec((t_chunk, B, Hp), lambda i: (i, 0, 0)),
                   pl.BlockSpec((B, Hp), lambda i: (0, 0))),   # resident carry
        compiler_params=pltpu.CompilerParams(
            dimension_semantics=("arbitrary",),           # sequential in time
            vmem_limit_bytes=48 * 1024 * 1024),
        cost_estimate=pl.CostEstimate(
            flops=2 * S * B * (Ip + Hp) * 3 * Hp,
            transcendentals=3 * S * B * Hp,
            bytes_accessed=(x_tm.size * 2 + wih_p.size * 2 + whh_p.size * 2
                            + S * B * Hp * 2 + B * Hp * 4)),
    )(x_tm, wih_p, whh_p, bih_p, bhh_p)
    return y_tm, h_n


# ----------------------------------------------------------------------------
# Parameter init (PyTorch-like) + packing into padded, per-gate lane-aligned
# layouts consumed by the kernels.
# ----------------------------------------------------------------------------
def _pack_gru_weights(wih_t, whh_t, bih, bhh, in_pad, hidden_pad):
    isz, three_h = wih_t.shape
    H = three_h // 3
    Hp = hidden_pad

    def pad_w(w, rows_pad):
        gates = [jnp.pad(w[:, g * H:(g + 1) * H],
                         ((0, rows_pad - w.shape[0]), (0, Hp - H)))
                 for g in range(3)]
        return jnp.concatenate(gates, axis=1)

    def pad_b(b):
        gates = [jnp.pad(b[g * H:(g + 1) * H], (0, Hp - H)) for g in range(3)]
        return jnp.concatenate(gates).reshape(1, 3 * Hp)

    return dict(
        wih=pad_w(wih_t, in_pad).astype(jnp.bfloat16),
        whh=pad_w(whh_t, Hp).astype(jnp.bfloat16),
        bih=pad_b(bih).astype(jnp.float32),
        bhh=pad_b(bhh).astype(jnp.float32),
    )


def init_params(key, in_channels, input_size, hidden_size, num_layers):
    feat_pad = _round_up(input_size, LANE)
    hidden_pad = _round_up(hidden_size, LANE)
    keys = jax.random.split(key, 2 + 4 * num_layers)
    kconv = 1.0 / jnp.sqrt(in_channels * 9.0)
    conv_w = jax.random.uniform(keys[0], (3, 3, in_channels, input_size),
                                jnp.float32, -kconv, kconv)
    conv_b = jax.random.uniform(keys[1], (input_size,), jnp.float32,
                                -kconv, kconv)
    kh = 1.0 / jnp.sqrt(float(hidden_size))
    gru = []
    for l in range(num_layers):
        isz = input_size if l == 0 else hidden_size
        in_pad = feat_pad if l == 0 else hidden_pad
        base = 2 + 4 * l
        wih_t = jax.random.uniform(keys[base + 0], (isz, 3 * hidden_size),
                                   jnp.float32, -kh, kh)
        whh_t = jax.random.uniform(keys[base + 1], (hidden_size, 3 * hidden_size),
                                   jnp.float32, -kh, kh)
        bih = jax.random.uniform(keys[base + 2], (3 * hidden_size,),
                                 jnp.float32, -kh, kh)
        bhh = jax.random.uniform(keys[base + 3], (3 * hidden_size,),
                                 jnp.float32, -kh, kh)
        gru.append(_pack_gru_weights(wih_t, whh_t, bih, bhh, in_pad, hidden_pad))
    return {"conv_w": conv_w, "conv_b": conv_b, "gru": gru,
            "input_size": input_size, "hidden_size": hidden_size}


# ----------------------------------------------------------------------------
# Encoder forward
# ----------------------------------------------------------------------------
def encoder_forward(images, params):
    # images: (B, S, C, H, W)
    B, S, C, H, W = images.shape
    flat = images.reshape(B * S, C, H, W)                 # images.view(...)
    feats_pad = conv_features(flat, params["conv_w"], params["conv_b"])  # (B*S, 128) f32
    F = params["input_size"]
    Hreal = params["hidden_size"]

    # nn.Dropout is the identity in eval mode.
    seq_feats = feats_pad[:, :F].reshape(B, S, F)         # (B, S, F) f32

    # One batch-major -> time-major transpose for all GRU layers; padded lanes
    # (zeros beyond F / hidden) are preserved through every layer.
    x_tm = jnp.transpose(feats_pad.reshape(B, S, -1), (1, 0, 2)).astype(jnp.bfloat16)

    h_n = []
    for layer in params["gru"]:
        x_tm, h_last = gru_layer_tm(x_tm, layer["wih"], layer["whh"],
                                    layer["bih"], layer["bhh"])
        # inter-layer GRU dropout: identity in eval mode
        h_n.append(h_last[:, :Hreal])
    h_n = jnp.stack(h_n, axis=0)                          # (L, B, hidden)
    return h_n, seq_feats


if __name__ == "__main__":
    B, S, C, H, W = 2, 8, 3, 16, 16
    input_size, hidden_size, num_layers = 32, 32, 2

    key = jax.random.PRNGKey(0)
    k_img, k_par = jax.random.split(key)
    images = jax.random.normal(k_img, (B, S, C, H, W), jnp.float32)
    params = init_params(k_par, C, input_size, hidden_size, num_layers)

    h_n, seq_feats = encoder_forward(images, params)
    jax.block_until_ready((h_n, seq_feats))

    assert h_n.shape == (num_layers, B, hidden_size)
    assert seq_feats.shape == (B, S, input_size)
    print("KERNEL_OK")
</pallas_src>

<mosaic_0001>
module attributes {stable_mosaic.version = 11 : i64} {
  func.func @_conv_gemm_kernel(%arg0: i32, %arg1: memref<8x256x128xbf16, #tpu.memory_space<vmem>>, %arg2: memref<128x128xbf16, #tpu.memory_space<vmem>>, %arg3: memref<1x128xf32, #tpu.memory_space<vmem>>, %arg4: memref<8x128xf32, #tpu.memory_space<vmem>>) attributes {dimension_semantics = [#tpu.dimension_semantics<parallel>], iteration_bounds = array<i64: 2>, scalar_prefetch = 0 : i64, scratch_operands = 0 : i64, tpu.core_type = #tpu.core_type<tc>, window_params = [{transform_indices = @transform_0, window_bounds = array<i64: 8, 256, 128>}, {pipeline_mode = #tpu.pipeline_mode<synchronous>, transform_indices = @transform_1, window_bounds = array<i64: 128, 128>}, {pipeline_mode = #tpu.pipeline_mode<synchronous>, transform_indices = @transform_2, window_bounds = array<i64: 1, 128>}, {transform_indices = @transform_3, window_bounds = array<i64: 8, 128>}]} {
    %c0 = arith.constant 0 : index
    %c0_0 = arith.constant 0 : index
    %c0_1 = arith.constant 0 : index
    %0 = vector.load %arg1[%c0, %c0_0, %c0_1] : memref<8x256x128xbf16, #tpu.memory_space<vmem>>, vector<8x256x128xbf16>
    %1 = vector.shape_cast %0 : vector<8x256x128xbf16> to vector<2048x128xbf16>
    %c0_2 = arith.constant 0 : index
    %c0_3 = arith.constant 0 : index
    %2 = vector.load %arg2[%c0_2, %c0_3] : memref<128x128xbf16, #tpu.memory_space<vmem>>, vector<128x128xbf16>
    %cst = arith.constant dense<0.000000e+00> : vector<2048x128xf32>
    %3 = tpu.matmul %1, %2, %cst {dimension_numbers = #tpu.dot_dimension_numbers<[1], [0], [0], [1], [0, 0, 1, 1], [], []>} : vector<2048x128xbf16>, vector<128x128xbf16>, vector<2048x128xf32> -> vector<2048x128xf32>
    %c0_4 = arith.constant 0 : index
    %c0_5 = arith.constant 0 : index
    %4 = vector.load %arg3[%c0_4, %c0_5] : memref<1x128xf32, #tpu.memory_space<vmem>>, vector<1x128xf32>
    %5 = vector.broadcast %4 : vector<1x128xf32> to vector<2048x128xf32>
    %6 = arith.addf %3, %5 : vector<2048x128xf32>
    %cst_6 = arith.constant 0.000000e+00 : f32
    %7 = vector.broadcast %cst_6 : f32 to vector<2048x128xf32>
    %8 = arith.maximumf %6, %7 : vector<2048x128xf32>
    %9 = vector.shape_cast %8 : vector<2048x128xf32> to vector<8x256x128xf32>
    %cst_7 = arith.constant dense<0.000000e+00> : vector<8x128xf32>
    %10 = vector.multi_reduction <add>, %9, %cst_7 [1] : vector<8x256x128xf32> to vector<8x128xf32>
    %cst_8 = arith.constant 2.560000e+02 : f32
    %11 = vector.broadcast %cst_8 : f32 to vector<8x128xf32>
    %12 = arith.divf %10, %11 : vector<8x128xf32>
    %c0_9 = arith.constant 0 : index
    %c0_10 = arith.constant 0 : index
    %13 = vector.load %arg4[%c0_9, %c0_10] : memref<8x128xf32, #tpu.memory_space<vmem>>, vector<8x128xf32>
    tpu.vector_store %arg4[%c0_9, %c0_10], %12 {strides = array<i32>} : memref<8x128xf32, #tpu.memory_space<vmem>>, vector<8x128xf32>,
    return
  }
  func.func @transform_0(%arg0: i32) -> (i32, i32, i32) {
    %c0_i32 = arith.constant 0 : i32
    %c0_i32_0 = arith.constant 0 : i32
    %c0_i32_1 = arith.constant 0 : i32
    return %arg0, %c0_i32, %c0_i32_0 : i32, i32, i32
  }
  func.func @transform_1(%arg0: i32) -> (i32, i32) {
    %c0_i32 = arith.constant 0 : i32
    %c0_i32_0 = arith.constant 0 : i32
    %c0_i32_1 = arith.constant 0 : i32
    return %c0_i32, %c0_i32_0 : i32, i32
  }
  func.func @transform_2(%arg0: i32) -> (i32, i32) {
    %c0_i32 = arith.constant 0 : i32
    %c0_i32_0 = arith.constant 0 : i32
    %c0_i32_1 = arith.constant 0 : i32
    return %c0_i32, %c0_i32_0 : i32, i32
  }
  func.func @transform_3(%arg0: i32) -> (i32, i32) {
    %c0_i32 = arith.constant 0 : i32
    %c0_i32_0 = arith.constant 0 : i32
    return %arg0, %c0_i32 : i32, i32
  }
}

</mosaic_0001>

<llo_original>
// kernel: tpu_custom_call.1
$region0: #{tpu_custom_call.1}
  #allocation0 [shape = 'u32[]', space=smem, size = 0x4, offset = 0x4, fixed_abs, tag = 'smem constant byte address 0x4 - core index']
  #allocation1 [shape = 'u32[144,128]{1,0:T(1,128)}', space=vmem, size = 0x12000, scoped, tag = 'internal scratch']
  %s0 = inlined_call_operand.hbm [shape: bf16[16,256,128], index: 0, kind: input, shape index: {}]
  %s1 = inlined_call_operand.hbm [shape: bf16[128,128], index: 1, kind: input, shape index: {}]
  %s2 = inlined_call_operand.vmem [shape: f32[1,128], index: 2, kind: input, shape index: {}]
  %s3 = inlined_call_operand.hbm [shape: f32[16,128], index: 3, kind: output, shape index: {}]
  %s4 = sld [smem:[#allocation0]]
  $region53: #{tpu_custom_call.1} parent=0
    _
  %s6 = ssub.s32 1, %s4
  %s7 = scalar_select 0, %s6, %s4
  $region1: #{tpu_custom_call.1} parent=0
    #allocation2 [shape = 'u8[1048576]{0}', space=vmem, size = 0x100000, scoped, tag = 'input window, operand 0']
    #allocation3 [shape = 's32[2]{0}', space=sflag, size = 0x8, scoped, tag = 'scoped memory for tpu_custom_call.1']
    #allocation4 [shape = 's32[2]{0}', space=sflag, size = 0x8, scoped, tag = 'scoped memory for tpu_custom_call.1']
    #allocation5 [shape = 'u8[32768]{0}', space=vmem, size = 0x8000, scoped, tag = 'input window, operand 1, single buffered']
    #allocation6 [shape = 's32[1]{0}', space=sflag, size = 0x4, scoped, tag = 'scoped memory for tpu_custom_call.1']
    #allocation7 [shape = 'u8[8192]{0}', space=vmem, size = 0x2000, scoped, tag = 'output window, operand 0']
    %8 = vsyncpa [#allocation3], 0
    %s9 = scalar_lea.sflag [#allocation3], 1
    %10 = vsyncpa %s9, 0
    %11 = vsyncpa [#allocation6], 0
    %12 = vsyncpa [#allocation4], 0
    %s13 = scalar_lea.sflag [#allocation4], 1
    %14 = vsyncpa %s13, 0
    loop: start=0, step=1, limit=4
    $region2: #{tpu_custom_call.1} parent=1 // loop_pre_header
      _
    $region3: #{tpu_custom_call.1} parent=1 // loop_header
      %s16 = sphi 0, %s20
      %p17 = scmp.ge.s32.totalorder %s16, 4
      %s26 = sphi 0, %s28
      %s29 = sphi 0, %s26
      %s30 = sphi 0, %s29
      %s46 = sphi 0, %s30
      %s50 = sphi 0, %s50
      %s52 = sphi 0, %s50
      %s53 = sphi 0, %s52
      %s67 = sphi 0, %s53
      %s71 = sphi 0, %s71
      %s73 = sphi 0, %s71
      %s74 = sphi 0, %s73
      %s88 = sphi 0, %s74
      %s94 = sphi 0, %s96
      %s97 = sphi 0, %s94
      %s98 = sphi 0, %s97
      %s114 = sphi 0, %s98
    $region4: #{tpu_custom_call.1} parent=1 // loop_header_branch
      %19 = sbr.rel (%p17) target = $region8
    $region5: #{tpu_custom_call.1} parent=1 // loop_body
      %s21 = ssub.s32 %s16, 1
      %s22 = ssub.s32 %s16, 2
      %s23 = sadd.s32 %s16, 1
      %s24 = ssub.s32 %s16, %s23
      %p25 = scmp.eq.s32.totalorder %s24, 0
      %s27 = sadd.s32 %s26, 1
      %s28 = scalar_select %p25, %s26, %s27
      %p31 = pneg %p25
      %p32 = scmp.eq.s32.totalorder %s16, 1
      %p33 = por %p31, %p32
      %p34 = scmp.ne.s32.totalorder %s26, %s29
      %p35 = scmp.eq.s32.totalorder %s16, 0
      %p36 = por %p34, %p35
      %p37 = scmp.ne.s32.totalorder %s26, %s29
      %p38 = scmp.eq.s32.totalorder %s21, 1
      %p39 = por %p37, %p38
      %p40 = scmp.ne.s32.totalorder %s29, %s30
      %p41 = scmp.eq.s32.totalorder %s21, 0
      %p42 = por %p40, %p41
      %p43 = scmp.ne.s32.totalorder %s29, %s30
      %p44 = scmp.eq.s32.totalorder %s22, 1
      %p45 = por %p43, %p44
      %p47 = scmp.ne.s32.totalorder %s30, %s46
      %p48 = scmp.eq.s32.totalorder %s22, 0
      %p49 = por %p47, %p48
      %s51 = sadd.s32 %s50, 1
      %p54 = scmp.eq.s32.totalorder %s16, 1
      %p55 = scmp.ne.s32.totalorder %s50, %s52
      %p56 = scmp.eq.s32.totalorder %s16, 0
      %p57 = por %p55, %p56
      %p58 = scmp.ne.s32.totalorder %s50, %s52
      %p59 = scmp.eq.s32.totalorder %s21, 1
      %p60 = por %p58, %p59
      %p61 = scmp.ne.s32.totalorder %s52, %s53
      %p62 = scmp.eq.s32.totalorder %s21, 0
      %p63 = por %p61, %p62
      %p64 = scmp.ne.s32.totalorder %s52, %s53
      %p65 = scmp.eq.s32.totalorder %s22, 1
      %p66 = por %p64, %p65
      %p68 = scmp.ne.s32.totalorder %s53, %s67
      %p69 = scmp.eq.s32.totalorder %s22, 0
      %p70 = por %p68, %p69
      %s72 = sadd.s32 %s71, 1
      %p75 = scmp.eq.s32.totalorder %s16, 1
      %p76 = scmp.ne.s32.totalorder %s71, %s73
      %p77 = scmp.eq.s32.totalorder %s16, 0
      %p78 = por %p76, %p77
      %p79 = scmp.ne.s32.totalorder %s71, %s73
      %p80 = scmp.eq.s32.totalorder %s21, 1
      %p81 = por %p79, %p80
      %p82 = scmp.ne.s32.totalorder %s73, %s74
      %p83 = scmp.eq.s32.totalorder %s21, 0
      %p84 = por %p82, %p83
      %p85 = scmp.ne.s32.totalorder %s73, %s74
      %p86 = scmp.eq.s32.totalorder %s22, 1
      %p87 = por %p85, %p86
      %p89 = scmp.ne.s32.totalorder %s74, %s88
      %p90 = scmp.eq.s32.totalorder %s22, 0
      %p91 = por %p89, %p90
      %s92 = ssub.s32 %s16, %s23
      %p93 = scmp.eq.s32.totalorder %s92, 0
      %s95 = sadd.s32 %s94, 1
      %s96 = scalar_select %p93, %s94, %s95
      %p99 = pneg %p93
      %p100 = scmp.eq.s32.totalorder %s16, 1
      %p101 = por %p99, %p100
      %p102 = scmp.ne.s32.totalorder %s94, %s97
      %p103 = scmp.eq.s32.totalorder %s16, 0
      %p104 = por %p102, %p103
      %p105 = scmp.ne.s32.totalorder %s94, %s97
      %p106 = scmp.eq.s32.totalorder %s21, 1
      %p107 = por %p105, %p106
      %p108 = scmp.ne.s32.totalorder %s97, %s98
      %p109 = scmp.eq.s32.totalorder %s21, 0
      %p110 = por %p108, %p109
      %p111 = scmp.ne.s32.totalorder %s97, %s98
      %p112 = scmp.eq.s32.totalorder %s22, 1
      %p113 = por %p111, %p112
      %p115 = scmp.ne.s32.totalorder %s98, %s114
      %p116 = scmp.eq.s32.totalorder %s22, 0
      %p117 = por %p115, %p116
      %p118 = scmp.le.s32.totalorder 1, %s16
      %p119 = scmp.lt.s32.totalorder %s16, 3
      %p120 = pnand %p118, %p119
      %p121 = pneg %p120
      // Predicated region
      $region9: #{tpu_custom_call.1} parent=5 // pred_check
        _
      $region10: #{tpu_custom_call.1} parent=5 // pred_check_branch
        %123 = sbr.rel (%p120) target = $region12
      $region11: #{tpu_custom_call.1} parent=5 // pred_region
        %s124 = ssub.s32 %s16, 1
        // Predicated region
        $region13: #{tpu_custom_call.1} parent=11 // pred_check
          %p125 = pneg %p63
        $region14: #{tpu_custom_call.1} parent=11 // pred_check_branch
          %127 = sbr.rel (%p125) target = $region16
        $region15: #{tpu_custom_call.1} parent=11 // pred_region
          %s129 = ssub.s32 1024, 1024
          %130 = vsyncadd [#allocation6], %s129
          %s131 = sshll.u32 [#allocation5], 4
          %s132 = int_to_ptr.vmem [resolvable:$true] %s131
          %137 = dma.hbm_to_vmem [thread:$0]  %s1, 1024, %s132, [#allocation6], 64, 64, 4
        $region16: #{tpu_custom_call.1} parent=11 // pred_fallthru
          _
        // Predicated region
        $region17: #{tpu_custom_call.1} parent=11 // pred_check
          %p138 = pneg %p84
        $region18: #{tpu_custom_call.1} parent=11 // pred_check_branch
          %140 = sbr.rel (%p138) target = $region20
        $region19: #{tpu_custom_call.1} parent=11 // pred_region
          _
        $region20: #{tpu_custom_call.1} parent=11 // pred_fallthru
          _
      $region12: #{tpu_custom_call.1} parent=5 // pred_fallthru
        _
      %p141 = scmp.lt.s32.totalorder %s16, 2
      // Predicated region
      $region21: #{tpu_custom_call.1} parent=5 // pred_check
        %p142 = pneg %p141
      $region22: #{tpu_custom_call.1} parent=5 // pred_check_branch
        %144 = sbr.rel (%p142) target = $region24
      $region23: #{tpu_custom_call.1} parent=5 // pred_region
        // Predicated region
        $region25: #{tpu_custom_call.1} parent=23 // pred_check
          %p145 = pneg %p36
        $region26: #{tpu_custom_call.1} parent=23 // pred_check_branch
          %147 = sbr.rel (%p145) target = $region28
        $region27: #{tpu_custom_call.1} parent=23 // pred_region
          %s148 = sand.u32 %s26, 1
          %s149 = scalar_lea.sflag [#allocation3], %s148
          %s150 = sand.u32 %s26, 1
          %s151 = smul.addr %s150, 1024
          %s152 = scalar_lea.vmem [#allocation2], %s151
          %s153 = smul.u32 8, %s16
          %s155 = ssub.s32 16384, 16384
          %156 = vsyncadd %s149, %s155
          %s157 = smul.addr %s153, 32
          %s158 = smul.addr %s157, 64
          %s159 = scalar_lea.hbm %s0, %s158
          %s160 = sshll.u32 %s152, 4
          %s161 = int_to_ptr.vmem [resolvable:$true] %s160
          %166 = dma.hbm_to_vmem [thread:$0]  %s159, 16384, %s161, %s149, 64, 64, 4
        $region28: #{tpu_custom_call.1} parent=23 // pred_fallthru
          _
      $region24: #{tpu_custom_call.1} parent=5 // pred_fallthru
        _
      %p167 = scmp.le.s32.totalorder 1, %s16
      %p168 = scmp.lt.s32.totalorder %s16, 3
      %p169 = pnand %p167, %p168
      %p170 = pneg %p169
      // Predicated region
      $region29: #{tpu_custom_call.1} parent=5 // pred_check
        _
      $region30: #{tpu_custom_call.1} parent=5 // pred_check_branch
        %172 = sbr.rel (%p169) target = $region32
      $region31: #{tpu_custom_call.1} parent=5 // pred_region
        %s173 = ssub.s32 %s16, 1
        %s174 = sand.u32 %s29, 1
        %s175 = scalar_lea.sflag [#allocation3], %s174
        %s176 = sand.u32 %s29, 1
        %s177 = smul.addr %s176, 1024
        %s178 = scalar_lea.vmem [#allocation2], %s177
        // Predicated region
        $region33: #{tpu_custom_call.1} parent=31 // pred_check
          %p179 = pneg %p42
        $region34: #{tpu_custom_call.1} parent=31 // pred_check_branch
          %181 = sbr.rel (%p179) target = $region36
        $region35: #{tpu_custom_call.1} parent=31 // pred_region
          %182 = dma.done %s175, 16384
        $region36: #{tpu_custom_call.1} parent=31 // pred_fallthru
          _
        // Predicated region
        $region37: #{tpu_custom_call.1} parent=31 // pred_check
          %p183 = pneg %p63
        $region38: #{tpu_custom_call.1} parent=31 // pred_check_branch
          %185 = sbr.rel (%p183) target = $region40
        $region39: #{tpu_custom_call.1} parent=31 // pred_region
          %186 = dma.done [#allocation6], 1024
        $region40: #{tpu_custom_call.1} parent=31 // pred_fallthru
          _
        %s187 = sand.u32 %s29, 1
        %s188 = scalar_lea.sflag [#allocation3], %s187
        %s189 = sand.u32 %s29, 1
        %s190 = smul.addr %s189, 1024
        %s191 = scalar_lea.vmem [#allocation2], %s190
        %p192 = pneg %p42
        %p193 = pneg %p39
        %p194 = pneg %p63
        %p195 = pneg %p60
        %p196 = pneg %p84
        %p197 = pneg %p81
        %p198 = pneg %p110
        %p199 = pneg %p107
        %s200 = sand.u32 %s97, 1
        %s201 = scalar_lea.sflag [#allocation4], %s200
        %s202 = sand.u32 %s97, 1
        %s203 = smul.addr %s202, 8
        %s204 = scalar_lea.vmem [#allocation7], %s203
        %s205 = smul.u32 8, %s21
        %v207 = vld [vmem:[%s178] sm:$0xf]
        %v208 = vld [vmem:[%s178 + $0x4] sm:$0xf]
        %v209 = vld [vmem:[%s178 + $0x8] sm:$0xf]
        %v210 = vld [vmem:[%s178 + $0xc] sm:$0xf]
        %v211 = vld [vmem:[%s178 + $0x10] sm:$0xf]
        %v212 = vld [vmem:[%s178 + $0x14] sm:$0xf]
        %v213 = vld [vmem:[%s178 + $0x18] sm:$0xf]
        %v214 = vld [vmem:[%s178 + $0x1c] sm:$0xf]
        %v215 = vld [vmem:[%s178 + $0x20] sm:$0xf]
        %v216 = vld [vmem:[%s178 + $0x24] sm:$0xf]
        %v217 = vld [vmem:[%s178 + $0x28] sm:$0xf]
        %v218 = vld [vmem:[%s178 + $0x2c] sm:$0xf]
        %v219 = vld [vmem:[%s178 + $0x30] sm:$0xf]
        %v220 = vld [vmem:[%s178 + $0x34] sm:$0xf]
        %v221 = vld [vmem:[%s178 + $0x38] sm:$0xf]
        %v222 = vld [vmem:[%s178 + $0x3c] sm:$0xf]
        %v223 = vld [vmem:[%s178 + $0x40] sm:$0xf]
        %v224 = vld [vmem:[%s178 + $0x44] sm:$0xf]
        %v225 = vld [vmem:[%s178 + $0x48] sm:$0xf]
        %v226 = vld [vmem:[%s178 + $0x4c] sm:$0xf]
        %v227 = vld [vmem:[%s178 + $0x50] sm:$0xf]
        %v228 = vld [vmem:[%s178 + $0x54] sm:$0xf]
        %v229 = vld [vmem:[%s178 + $0x58] sm:$0xf]
        %v230 = vld [vmem:[%s178 + $0x5c] sm:$0xf]
        %v231 = vld [vmem:[%s178 + $0x60] sm:$0xf]
        %v232 = vld [vmem:[%s178 + $0x64] sm:$0xf]
        %v233 = vld [vmem:[%s178 + $0x68] sm:$0xf]
        %v234 = vld [vmem:[%s178 + $0x6c] sm:$0xf]
        %v235 = vld [vmem:[%s178 + $0x70] sm:$0xf]
        %v236 = vld [vmem:[%s178 + $0x74] sm:$0xf]
        %v237 = vld [vmem:[%s178 + $0x78] sm:$0xf]
        %v238 = vld [vmem:[%s178 + $0x7c] sm:$0xf]
        %v239 = vld [vmem:[%s178 + $0x80] sm:$0xf]
        %v240 = vld [vmem:[%s178 + $0x84] sm:$0xf]
        %v241 = vld [vmem:[%s178 + $0x88] sm:$0xf]
        %v242 = vld [vmem:[%s178 + $0x8c] sm:$0xf]
        %v243 = vld [vmem:[%s178 + $0x90] sm:$0xf]
        %v244 = vld [vmem:[%s178 + $0x94] sm:$0xf]
        %v245 = vld [vmem:[%s178 + $0x98] sm:$0xf]
        %v246 = vld [vmem:[%s178 + $0x9c] sm:$0xf]
        %v247 = vld [vmem:[%s178 + $0xa0] sm:$0xf]
        %v248 = vld [vmem:[%s178 + $0xa4] sm:$0xf]
        %v249 = vld [vmem:[%s178 + $0xa8] sm:$0xf]
        %v250 = vld [vmem:[%s178 + $0xac] sm:$0xf]
        %v251 = vld [vmem:[%s178 + $0xb0] sm:$0xf]
        %v252 = vld [vmem:[%s178 + $0xb4] sm:$0xf]
        %v253 = vld [vmem:[%s178 + $0xb8] sm:$0xf]
        %v254 = vld [vmem:[%s178 + $0xbc] sm:$0xf]
        %v255 = vld [vmem:[%s178 + $0xc0] sm:$0xf]
        %v256 = vld [vmem:[%s178 + $0xc4] sm:$0xf]
        %v257 = vld [vmem:[%s178 + $0xc8] sm:$0xf]
        %v258 = vld [vmem:[%s178 + $0xcc] sm:$0xf]
        %v259 = vld [vmem:[%s178 + $0xd0] sm:$0xf]
        %v260 = vld [vmem:[%s178 + $0xd4] sm:$0xf]
        %v261 = vld [vmem:[%s178 + $0xd8] sm:$0xf]
        %v262 = vld [vmem:[%s178 + $0xdc] sm:$0xf]
        %v263 = vld [vmem:[%s178 + $0xe0] sm:$0xf]
        %v264 = vld [vmem:[%s178 + $0xe4] sm:$0xf]
        %v265 = vld [vmem:[%s178 + $0xe8] sm:$0xf]
        %v266 = vld [vmem:[%s178 + $0xec] sm:$0xf]
        %v267 = vld [vmem:[%s178 + $0xf0] sm:$0xf]
        %v268 = vld [vmem:[%s178 + $0xf4] sm:$0xf]
        %v269 = vld [vmem:[%s178 + $0xf8] sm:$0xf]
        %v270 = vld [vmem:[%s178 + $0xfc] sm:$0xf]
        %v271 = vld [vmem:[%s178 + $0x100] sm:$0xf]
        %v272 = vld [vmem:[%s178 + $0x104] sm:$0xf]
        %v273 = vld [vmem:[%s178 + $0x108] sm:$0xf]
        %v274 = vld [vmem:[%s178 + $0x10c] sm:$0xf]
        %v275 = vld [vmem:[%s178 + $0x110] sm:$0xf]
        %v276 = vld [vmem:[%s178 + $0x114] sm:$0xf]
        %v277 = vld [vmem:[%s178 + $0x118] sm:$0xf]
        %v278 = vld [vmem:[%s178 + $0x11c] sm:$0xf]
        %v279 = vld [vmem:[%s178 + $0x120] sm:$0xf]
        %v280 = vld [vmem:[%s178 + $0x124] sm:$0xf]
        %v281 = vld [vmem:[%s178 + $0x128] sm:$0xf]
        %v282 = vld [vmem:[%s178 + $0x12c] sm:$0xf]
        %v283 = vld [vmem:[%s178 + $0x130] sm:$0xf]
        %v284 = vld [vmem:[%s178 + $0x134] sm:$0xf]
        %v285 = vld [vmem:[%s178 + $0x138] sm:$0xf]
        %v286 = vld [vmem:[%s178 + $0x13c] sm:$0xf]
        %v287 = vld [vmem:[%s178 + $0x140] sm:$0xf]
        %v288 = vld [vmem:[%s178 + $0x144] sm:$0xf]
        %v289 = vld [vmem:[%s178 + $0x148] sm:$0xf]
        %v290 = vld [vmem:[%s178 + $0x14c] sm:$0xf]
        %v291 = vld [vmem:[%s178 + $0x150] sm:$0xf]
        %v292 = vld [vmem:[%s178 + $0x154] sm:$0xf]
        %v293 = vld [vmem:[%s178 + $0x158] sm:$0xf]
        %v294 = vld [vmem:[%s178 + $0x15c] sm:$0xf]
        %v295 = vld [vmem:[%s178 + $0x160] sm:$0xf]
        %v296 = vld [vmem:[%s178 + $0x164] sm:$0xf]
        %v297 = vld [vmem:[%s178 + $0x168] sm:$0xf]
        %v298 = vld [vmem:[%s178 + $0x16c] sm:$0xf]
        %v299 = vld [vmem:[%s178 + $0x170] sm:$0xf]
        %v300 = vld [vmem:[%s178 + $0x174] sm:$0xf]
        %v301 = vld [vmem:[%s178 + $0x178] sm:$0xf]
        %v302 = vld [vmem:[%s178 + $0x17c] sm:$0xf]
        %v303 = vld [vmem:[%s178 + $0x180] sm:$0xf]
        %v304 = vld [vmem:[%s178 + $0x184] sm:$0xf]
        %v305 = vld [vmem:[%s178 + $0x188] sm:$0xf]
        %v306 = vld [vmem:[%s178 + $0x18c] sm:$0xf]
        %v307 = vld [vmem:[%s178 + $0x190] sm:$0xf]
        %v308 = vld [vmem:[%s178 + $0x194] sm:$0xf]
        %v309 = vld [vmem:[%s178 + $0x198] sm:$0xf]
        %v310 = vld [vmem:[%s178 + $0x19c] sm:$0xf]
        %v311 = vld [vmem:[%s178 + $0x1a0] sm:$0xf]
        %v312 = vld [vmem:[%s178 + $0x1a4] sm:$0xf]
        %v313 = vld [vmem:[%s178 + $0x1a8] sm:$0xf]
        %v314 = vld [vmem:[%s178 + $0x1ac] sm:$0xf]
        %v315 = vld [vmem:[%s178 + $0x1b0] sm:$0xf]
        %v316 = vld [vmem:[%s178 + $0x1b4] sm:$0xf]
        %v317 = vld [vmem:[%s178 + $0x1b8] sm:$0xf]
        %v318 = vld [vmem:[%s178 + $0x1bc] sm:$0xf]
        %v319 = vld [vmem:[%s178 + $0x1c0] sm:$0xf]
        %v320 = vld [vmem:[%s178 + $0x1c4] sm:$0xf]
        %v321 = vld [vmem:[%s178 + $0x1c8] sm:$0xf]
        %v322 = vld [vmem:[%s178 + $0x1cc] sm:$0xf]
        %v323 = vld [vmem:[%s178 + $0x1d0] sm:$0xf]
        %v324 = vld [vmem:[%s178 + $0x1d4] sm:$0xf]
        %v325 = vld [vmem:[%s178 + $0x1d8] sm:$0xf]
        %v326 = vld [vmem:[%s178 + $0x1dc] sm:$0xf]
        %v327 = vld [vmem:[%s178 + $0x1e0] sm:$0xf]
        %v328 = vld [vmem:[%s178 + $0x1e4] sm:$0xf]
        %v329 = vld [vmem:[%s178 + $0x1e8] sm:$0xf]
        %v330 = vld [vmem:[%s178 + $0x1ec] sm:$0xf]
        %v331 = vld [vmem:[%s178 + $0x1f0] sm:$0xf]
        %v332 = vld [vmem:[%s178 + $0x1f4] sm:$0xf]
        %v333 = vld [vmem:[%s178 + $0x1f8] sm:$0xf]
        %v334 = vld [vmem:[%s178 + $0x1fc] sm:$0xf]
        %v335 = vld [vmem:[%s178 + $0x200] sm:$0xf]
        %v336 = vld [vmem:[%s178 + $0x204] sm:$0xf]
        %v337 = vld [vmem:[%s178 + $0x208] sm:$0xf]
        %v338 = vld [vmem:[%s178 + $0x20c] sm:$0xf]
        %v339 = vld [vmem:[%s178 + $0x210] sm:$0xf]
        %v340 = vld [vmem:[%s178 + $0x214] sm:$0xf]
        %v341 = vld [vmem:[%s178 + $0x218] sm:$0xf]
        %v342 = vld [vmem:[%s178 + $0x21c] sm:$0xf]
        %v343 = vld [vmem:[%s178 + $0x220] sm:$0xf]
        %v344 = vld [vmem:[%s178 + $0x224] sm:$0xf]
        %v345 = vld [vmem:[%s178 + $0x228] sm:$0xf]
        %v346 = vld [vmem:[%s178 + $0x22c] sm:$0xf]
        %v347 = vld [vmem:[%s178 + $0x230] sm:$0xf]
        %v348 = vld [vmem:[%s178 + $0x234] sm:$0xf]
        %v349 = vld [vmem:[%s178 + $0x238] sm:$0xf]
        %v350 = vld [vmem:[%s178 + $0x23c] sm:$0xf]
        %v351 = vld [vmem:[%s178 + $0x240] sm:$0xf]
        %v352 = vld [vmem:[%s178 + $0x244] sm:$0xf]
        %v353 = vld [vmem:[%s178 + $0x248] sm:$0xf]
        %v354 = vld [vmem:[%s178 + $0x24c] sm:$0xf]
        %v355 = vld [vmem:[%s178 + $0x250] sm:$0xf]
        %v356 = vld [vmem:[%s178 + $0x254] sm:$0xf]
        %v357 = vld [vmem:[%s178 + $0x258] sm:$0xf]
        %v358 = vld [vmem:[%s178 + $0x25c] sm:$0xf]
        %v359 = vld [vmem:[%s178 + $0x260] sm:$0xf]
        %v360 = vld [vmem:[%s178 + $0x264] sm:$0xf]
        %v361 = vld [vmem:[%s178 + $0x268] sm:$0xf]
        %v362 = vld [vmem:[%s178 + $0x26c] sm:$0xf]
        %v363 = vld [vmem:[%s178 + $0x270] sm:$0xf]
        %v364 = vld [vmem:[%s178 + $0x274] sm:$0xf]
        %v365 = vld [vmem:[%s178 + $0x278] sm:$0xf]
        %v366 = vld [vmem:[%s178 + $0x27c] sm:$0xf]
        %v367 = vld [vmem:[%s178 + $0x280] sm:$0xf]
        %v368 = vld [vmem:[%s178 + $0x284] sm:$0xf]
        %v369 = vld [vmem:[%s178 + $0x288] sm:$0xf]
        %v370 = vld [vmem:[%s178 + $0x28c] sm:$0xf]
        %v371 = vld [vmem:[%s178 + $0x290] sm:$0xf]
        %v372 = vld [vmem:[%s178 + $0x294] sm:$0xf]
        %v373 = vld [vmem:[%s178 + $0x298] sm:$0xf]
        %v374 = vld [vmem:[%s178 + $0x29c] sm:$0xf]
        %v375 = vld [vmem:[%s178 + $0x2a0] sm:$0xf]
        %v376 = vld [vmem:[%s178 + $0x2a4] sm:$0xf]
        %v377 = vld [vmem:[%s178 + $0x2a8] sm:$0xf]
        %v378 = vld [vmem:[%s178 + $0x2ac] sm:$0xf]
        %v379 = vld [vmem:[%s178 + $0x2b0] sm:$0xf]
        %v380 = vld [vmem:[%s178 + $0x2b4] sm:$0xf]
        %v381 = vld [vmem:[%s178 + $0x2b8] sm:$0xf]
        %v382 = vld [vmem:[%s178 + $0x2bc] sm:$0xf]
        %v383 = vld [vmem:[%s178 + $0x2c0] sm:$0xf]
        %v384 = vld [vmem:[%s178 + $0x2c4] sm:$0xf]
        %v385 = vld [vmem:[%s178 + $0x2c8] sm:$0xf]
        %v386 = vld [vmem:[%s178 + $0x2cc] sm:$0xf]
        %v387 = vld [vmem:[%s178 + $0x2d0] sm:$0xf]
        %v388 = vld [vmem:[%s178 + $0x2d4] sm:$0xf]
        %v389 = vld [vmem:[%s178 + $0x2d8] sm:$0xf]
        %v390 = vld [vmem:[%s178 + $0x2dc] sm:$0xf]
        %v391 = vld [vmem:[%s178 + $0x2e0] sm:$0xf]
        %v392 = vld [vmem:[%s178 + $0x2e4] sm:$0xf]
        %v393 = vld [vmem:[%s178 + $0x2e8] sm:$0xf]
        %v394 = vld [vmem:[%s178 + $0x2ec] sm:$0xf]
        %v395 = vld [vmem:[%s178 + $0x2f0] sm:$0xf]
        %v396 = vld [vmem:[%s178 + $0x2f4] sm:$0xf]
        %v397 = vld [vmem:[%s178 + $0x2f8] sm:$0xf]
        %v398 = vld [vmem:[%s178 + $0x2fc] sm:$0xf]
        %v399 = vld [vmem:[%s178 + $0x300] sm:$0xf]
        %v400 = vld [vmem:[%s178 + $0x304] sm:$0xf]
        %v401 = vld [vmem:[%s178 + $0x308] sm:$0xf]
        %v402 = vld [vmem:[%s178 + $0x30c] sm:$0xf]
        %v403 = vld [vmem:[%s178 + $0x310] sm:$0xf]
        %v404 = vld [vmem:[%s178 + $0x314] sm:$0xf]
        %v405 = vld [vmem:[%s178 + $0x318] sm:$0xf]
        %v406 = vld [vmem:[%s178 + $0x31c] sm:$0xf]
        %v407 = vld [vmem:[%s178 + $0x320] sm:$0xf]
        %v408 = vld [vmem:[%s178 + $0x324] sm:$0xf]
        %v409 = vld [vmem:[%s178 + $0x328] sm:$0xf]
        %v410 = vld [vmem:[%s178 + $0x32c] sm:$0xf]
        %v411 = vld [vmem:[%s178 + $0x330] sm:$0xf]
        %v412 = vld [vmem:[%s178 + $0x334] sm:$0xf]
        %v413 = vld [vmem:[%s178 + $0x338] sm:$0xf]
        %v414 = vld [vmem:[%s178 + $0x33c] sm:$0xf]
        %v415 = vld [vmem:[%s178 + $0x340] sm:$0xf]
        %v416 = vld [vmem:[%s178 + $0x344] sm:$0xf]
        %v417 = vld [vmem:[%s178 + $0x348] sm:$0xf]
        %v418 = vld [vmem:[%s178 + $0x34c] sm:$0xf]
        %v419 = vld [vmem:[%s178 + $0x350] sm:$0xf]
        %v420 = vld [vmem:[%s178 + $0x354] sm:$0xf]
        %v421 = vld [vmem:[%s178 + $0x358] sm:$0xf]
        %v422 = vld [vmem:[%s178 + $0x35c] sm:$0xf]
        %v423 = vld [vmem:[%s178 + $0x360] sm:$0xf]
        %v424 = vld [vmem:[%s178 + $0x364] sm:$0xf]
        %v425 = vld [vmem:[%s178 + $0x368] sm:$0xf]
        %v426 = vld [vmem:[%s178 + $0x36c] sm:$0xf]
        %v427 = vld [vmem:[%s178 + $0x370] sm:$0xf]
        %v428 = vld [vmem:[%s178 + $0x374] sm:$0xf]
        %v429 = vld [vmem:[%s178 + $0x378] sm:$0xf]
        %v430 = vld [vmem:[%s178 + $0x37c] sm:$0xf]
        %v431 = vld [vmem:[%s178 + $0x380] sm:$0xf]
        %v432 = vld [vmem:[%s178 + $0x384] sm:$0xf]
        %v433 = vld [vmem:[%s178 + $0x388] sm:$0xf]
        %v434 = vld [vmem:[%s178 + $0x38c] sm:$0xf]
        %v435 = vld [vmem:[%s178 + $0x390] sm:$0xf]
        %v436 = vld [vmem:[%s178 + $0x394] sm:$0xf]
        %v437 = vld [vmem:[%s178 + $0x398] sm:$0xf]
        %v438 = vld [vmem:[%s178 + $0x39c] sm:$0xf]
        %v439 = vld [vmem:[%s178 + $0x3a0] sm:$0xf]
        %v440 = vld [vmem:[%s178 + $0x3a4] sm:$0xf]
        %v441 = vld [vmem:[%s178 + $0x3a8] sm:$0xf]
        %v442 = vld [vmem:[%s178 + $0x3ac] sm:$0xf]
        %v443 = vld [vmem:[%s178 + $0x3b0] sm:$0xf]
        %v444 = vld [vmem:[%s178 + $0x3b4] sm:$0xf]
        %v445 = vld [vmem:[%s178 + $0x3b8] sm:$0xf]
        %v446 = vld [vmem:[%s178 + $0x3bc] sm:$0xf]
        %v447 = vld [vmem:[%s178 + $0x3c0] sm:$0xf]
        %v448 = vld [vmem:[%s178 + $0x3c4] sm:$0xf]
        %v449 = vld [vmem:[%s178 + $0x3c8] sm:$0xf]
        %v450 = vld [vmem:[%s178 + $0x3cc] sm:$0xf]
        %v451 = vld [vmem:[%s178 + $0x3d0] sm:$0xf]
        %v452 = vld [vmem:[%s178 + $0x3d4] sm:$0xf]
        %v453 = vld [vmem:[%s178 + $0x3d8] sm:$0xf]
        %v454 = vld [vmem:[%s178 + $0x3dc] sm:$0xf]
        %v455 = vld [vmem:[%s178 + $0x3e0] sm:$0xf]
        %v456 = vld [vmem:[%s178 + $0x3e4] sm:$0xf]
        %v457 = vld [vmem:[%s178 + $0x3e8] sm:$0xf]
        %v458 = vld [vmem:[%s178 + $0x3ec] sm:$0xf]
        %v459 = vld [vmem:[%s178 + $0x3f0] sm:$0xf]
        %v460 = vld [vmem:[%s178 + $0x3f4] sm:$0xf]
        %v461 = vld [vmem:[%s178 + $0x3f8] sm:$0xf]
        %v462 = vld [vmem:[%s178 + $0x3fc] sm:$0xf]
        %v463 = vld [vmem:[#allocation5] sm:$0xf]
        %v464 = vld [vmem:[#allocation5 + $0x4] sm:$0xf]
        %v465 = vld [vmem:[#allocation5 + $0x8] sm:$0xf]
        %v466 = vld [vmem:[#allocation5 + $0xc] sm:$0xf]
        %v467 = vld [vmem:[#allocation5 + $0x10] sm:$0xf]
        %v468 = vld [vmem:[#allocation5 + $0x14] sm:$0xf]
        %v469 = vld [vmem:[#allocation5 + $0x18] sm:$0xf]
        %v470 = vld [vmem:[#allocation5 + $0x1c] sm:$0xf]
        %v471 = vld [vmem:[#allocation5 + $0x20] sm:$0xf]
        %v472 = vld [vmem:[#allocation5 + $0x24] sm:$0xf]
        %v473 = vld [vmem:[#allocation5 + $0x28] sm:$0xf]
        %v474 = vld [vmem:[#allocation5 + $0x2c] sm:$0xf]
        %v475 = vld [vmem:[#allocation5 + $0x30] sm:$0xf]
        %v476 = vld [vmem:[#allocation5 + $0x34] sm:$0xf]
        %v477 = vld [vmem:[#allocation5 + $0x38] sm:$0xf]
        %v478 = vld [vmem:[#allocation5 + $0x3c] sm:$0xf]
        %v479 = vld [vmem:[%s2] sm:$0x1]
        %v481 = vlaneseq
        %v482 = vshrl.u32 %v481, 7
        %v483 = vsub.s32 0, %v482
        %v484 = vrot.slane %v479, %v483
        %v742 = vunpack.c.l.b16 %v207
        %v743 = vunpack.c.l.b16 %v208
        %v744 = vunpack.c.l.b16 %v209
        %v745 = vunpack.c.l.b16 %v210
        %v746 = vunpack.c.l.b16 %v211
        %v747 = vunpack.c.l.b16 %v212
        %v748 = vunpack.c.l.b16 %v213
        %v749 = vunpack.c.l.b16 %v214
        %v750 = vunpack.c.l.b16 %v215
        %v751 = vunpack.c.l.b16 %v216
        %v752 = vunpack.c.l.b16 %v217
        %v753 = vunpack.c.l.b16 %v218
        %v754 = vunpack.c.l.b16 %v219
        %v755 = vunpack.c.l.b16 %v220
        %v756 = vunpack.c.l.b16 %v221
        %v757 = vunpack.c.l.b16 %v222
        %v758 = vunpack.c.l.b16 %v223
        %v759 = vunpack.c.l.b16 %v224
        %v760 = vunpack.c.l.b16 %v225
        %v761 = vunpack.c.l.b16 %v226
        %v762 = vunpack.c.l.b16 %v227
        %v763 = vunpack.c.l.b16 %v228
        %v764 = vunpack.c.l.b16 %v229
        %v765 = vunpack.c.l.b16 %v230
        %v766 = vunpack.c.l.b16 %v231
        %v767 = vunpack.c.l.b16 %v232
        %v768 = vunpack.c.l.b16 %v233
        %v769 = vunpack.c.l.b16 %v234
        %v770 = vunpack.c.l.b16 %v235
        %v771 = vunpack.c.l.b16 %v236
        %v772 = vunpack.c.l.b16 %v237
        %v773 = vunpack.c.l.b16 %v238
        %v774 = vunpack.c.l.b16 %v239
        %v775 = vunpack.c.l.b16 %v240
        %v776 = vunpack.c.l.b16 %v241
        %v777 = vunpack.c.l.b16 %v242
        %v778 = vunpack.c.l.b16 %v243
        %v779 = vunpack.c.l.b16 %v244
        %v780 = vunpack.c.l.b16 %v245
        %v781 = vunpack.c.l.b16 %v246
        %v782 = vunpack.c.l.b16 %v247
        %v783 = vunpack.c.l.b16 %v248
        %v784 = vunpack.c.l.b16 %v249
        %v785 = vunpack.c.l.b16 %v250
        %v786 = vunpack.c.l.b16 %v251
        %v787 = vunpack.c.l.b16 %v252
        %v788 = vunpack.c.l.b16 %v253
        %v789 = vunpack.c.l.b16 %v254
        %v790 = vunpack.c.l.b16 %v255
        %v791 = vunpack.c.l.b16 %v256
        %v792 = vunpack.c.l.b16 %v257
        %v793 = vunpack.c.l.b16 %v258
        %v794 = vunpack.c.l.b16 %v259
        %v795 = vunpack.c.l.b16 %v260
        %v796 = vunpack.c.l.b16 %v261
        %v797 = vunpack.c.l.b16 %v262
        %v798 = vunpack.c.l.b16 %v263
        %v799 = vunpack.c.l.b16 %v264
        %v800 = vunpack.c.l.b16 %v265
        %v801 = vunpack.c.l.b16 %v266
        %v802 = vunpack.c.l.b16 %v267
        %v803 = vunpack.c.l.b16 %v268
        %v804 = vunpack.c.l.b16 %v269
        %v805 = vunpack.c.l.b16 %v270
        %v806 = vunpack.c.l.b16 %v271
        %v807 = vunpack.c.l.b16 %v272
        %v808 = vunpack.c.l.b16 %v273
        %v809 = vunpack.c.l.b16 %v274
        %v810 = vunpack.c.l.b16 %v275
        %v811 = vunpack.c.l.b16 %v276
        %v812 = vunpack.c.l.b16 %v277
        %v813 = vunpack.c.l.b16 %v278
        %v814 = vunpack.c.l.b16 %v279
        %v815 = vunpack.c.l.b16 %v280
        %v816 = vunpack.c.l.b16 %v281
        %v817 = vunpack.c.l.b16 %v282
        %v818 = vunpack.c.l.b16 %v283
        %v819 = vunpack.c.l.b16 %v284
        %v820 = vunpack.c.l.b16 %v285
        %v821 = vunpack.c.l.b16 %v286
        %v822 = vunpack.c.l.b16 %v287
        %v823 = vunpack.c.l.b16 %v288
        %v824 = vunpack.c.l.b16 %v289
        %v825 = vunpack.c.l.b16 %v290
        %v826 = vunpack.c.l.b16 %v291
        %v827 = vunpack.c.l.b16 %v292
        %v828 = vunpack.c.l.b16 %v293
        %v829 = vunpack.c.l.b16 %v294
        %v830 = vunpack.c.l.b16 %v295
        %v831 = vunpack.c.l.b16 %v296
        %v832 = vunpack.c.l.b16 %v297
        %v833 = vunpack.c.l.b16 %v298
        %v834 = vunpack.c.l.b16 %v299
        %v835 = vunpack.c.l.b16 %v300
        %v836 = vunpack.c.l.b16 %v301
        %v837 = vunpack.c.l.b16 %v302
        %v838 = vunpack.c.l.b16 %v303
        %v839 = vunpack.c.l.b16 %v304
        %v840 = vunpack.c.l.b16 %v305
        %v841 = vunpack.c.l.b16 %v306
        %v842 = vunpack.c.l.b16 %v307
        %v843 = vunpack.c.l.b16 %v308
        %v844 = vunpack.c.l.b16 %v309
        %v845 = vunpack.c.l.b16 %v310
        %v846 = vunpack.c.l.b16 %v311
        %v847 = vunpack.c.l.b16 %v312
        %v848 = vunpack.c.l.b16 %v313
        %v849 = vunpack.c.l.b16 %v314
        %v850 = vunpack.c.l.b16 %v315
        %v851 = vunpack.c.l.b16 %v316
        %v852 = vunpack.c.l.b16 %v317
        %v853 = vunpack.c.l.b16 %v318
        %v854 = vunpack.c.l.b16 %v319
        %v855 = vunpack.c.l.b16 %v320
        %v856 = vunpack.c.l.b16 %v321
        %v857 = vunpack.c.l.b16 %v322
        %v858 = vunpack.c.l.b16 %v323
        %v859 = vunpack.c.l.b16 %v324
        %v860 = vunpack.c.l.b16 %v325
        %v861 = vunpack.c.l.b16 %v326
        %v862 = vunpack.c.l.b16 %v327
        %v863 = vunpack.c.l.b16 %v328
        %v864 = vunpack.c.l.b16 %v329
        %v865 = vunpack.c.l.b16 %v330
        %v866 = vunpack.c.l.b16 %v331
        %v867 = vunpack.c.l.b16 %v332
        %v868 = vunpack.c.l.b16 %v333
        %v869 = vunpack.c.l.b16 %v334
        %v870 = vunpack.c.l.b16 %v335
        %v871 = vunpack.c.l.b16 %v336
        %v872 = vunpack.c.l.b16 %v337
        %v873 = vunpack.c.l.b16 %v338
        %v874 = vunpack.c.l.b16 %v339
        %v875 = vunpack.c.l.b16 %v340
        %v876 = vunpack.c.l.b16 %v341
        %v877 = vunpack.c.l.b16 %v342
        %v878 = vunpack.c.l.b16 %v343
        %v879 = vunpack.c.l.b16 %v344
        %v880 = vunpack.c.l.b16 %v345
        %v881 = vunpack.c.l.b16 %v346
        %v882 = vunpack.c.l.b16 %v347
        %v883 = vunpack.c.l.b16 %v348
        %v884 = vunpack.c.l.b16 %v349
        %v885 = vunpack.c.l.b16 %v350
        %v886 = vunpack.c.l.b16 %v351
        %v887 = vunpack.c.l.b16 %v352
        %v888 = vunpack.c.l.b16 %v353
        %v889 = vunpack.c.l.b16 %v354
        %v890 = vunpack.c.l.b16 %v355
        %v891 = vunpack.c.l.b16 %v356
        %v892 = vunpack.c.l.b16 %v357
        %v893 = vunpack.c.l.b16 %v358
        %v894 = vunpack.c.l.b16 %v359
        %v895 = vunpack.c.l.b16 %v360
        %v896 = vunpack.c.l.b16 %v361
        %v897 = vunpack.c.l.b16 %v362
        %v898 = vunpack.c.l.b16 %v363
        %v899 = vunpack.c.l.b16 %v364
        %v900 = vunpack.c.l.b16 %v365
        %v901 = vunpack.c.l.b16 %v366
        %v902 = vunpack.c.l.b16 %v367
        %v903 = vunpack.c.l.b16 %v368
        %v904 = vunpack.c.l.b16 %v369
        %v905 = vunpack.c.l.b16 %v370
        %v906 = vunpack.c.l.b16 %v371
        %v907 = vunpack.c.l.b16 %v372
        %v908 = vunpack.c.l.b16 %v373
        %v909 = vunpack.c.l.b16 %v374
        %v910 = vunpack.c.l.b16 %v375
        %v911 = vunpack.c.l.b16 %v376
        %v912 = vunpack.c.l.b16 %v377
        %v913 = vunpack.c.l.b16 %v378
        %v914 = vunpack.c.l.b16 %v379
        %v915 = vunpack.c.l.b16 %v380
        %v916 = vunpack.c.l.b16 %v381
        %v917 = vunpack.c.l.b16 %v382
        %v918 = vunpack.c.l.b16 %v383
        %v919 = vunpack.c.l.b16 %v384
        %v920 = vunpack.c.l.b16 %v385
        %v921 = vunpack.c.l.b16 %v386
        %v922 = vunpack.c.l.b16 %v387
        %v923 = vunpack.c.l.b16 %v388
        %v924 = vunpack.c.l.b16 %v389
        %v925 = vunpack.c.l.b16 %v390
        %v926 = vunpack.c.l.b16 %v391
        %v927 = vunpack.c.l.b16 %v392
        %v928 = vunpack.c.l.b16 %v393
        %v929 = vunpack.c.l.b16 %v394
        %v930 = vunpack.c.l.b16 %v395
        %v931 = vunpack.c.l.b16 %v396
        %v932 = vunpack.c.l.b16 %v397
        %v933 = vunpack.c.l.b16 %v398
        %v934 = vunpack.c.l.b16 %v399
        %v935 = vunpack.c.l.b16 %v400
        %v936 = vunpack.c.l.b16 %v401
        %v937 = vunpack.c.l.b16 %v402
        %v938 = vunpack.c.l.b16 %v403
        %v939 = vunpack.c.l.b16 %v404
        %v940 = vunpack.c.l.b16 %v405
        %v941 = vunpack.c.l.b16 %v406
        %v942 = vunpack.c.l.b16 %v407
        %v943 = vunpack.c.l.b16 %v408
        %v944 = vunpack.c.l.b16 %v409
        %v945 = vunpack.c.l.b16 %v410
        %v946 = vunpack.c.l.b16 %v411
        %v947 = vunpack.c.l.b16 %v412
        %v948 = vunpack.c.l.b16 %v413
        %v949 = vunpack.c.l.b16 %v414
        %v950 = vunpack.c.l.b16 %v415
        %v951 = vunpack.c.l.b16 %v416
        %v952 = vunpack.c.l.b16 %v417
        %v953 = vunpack.c.l.b16 %v418
        %v954 = vunpack.c.l.b16 %v419
        %v955 = vunpack.c.l.b16 %v420
        %v956 = vunpack.c.l.b16 %v421
        %v957 = vunpack.c.l.b16 %v422
        %v958 = vunpack.c.l.b16 %v423
        %v959 = vunpack.c.l.b16 %v424
        %v960 = vunpack.c.l.b16 %v425
        %v961 = vunpack.c.l.b16 %v426
        %v962 = vunpack.c.l.b16 %v427
        %v963 = vunpack.c.l.b16 %v428
        %v964 = vunpack.c.l.b16 %v429
        %v965 = vunpack.c.l.b16 %v430
        %v966 = vunpack.c.l.b16 %v431
        %v967 = vunpack.c.l.b16 %v432
        %v968 = vunpack.c.l.b16 %v433
        %v969 = vunpack.c.l.b16 %v434
        %v970 = vunpack.c.l.b16 %v435
        %v971 = vunpack.c.l.b16 %v436
        %v972 = vunpack.c.l.b16 %v437
        %v973 = vunpack.c.l.b16 %v438
        %v974 = vunpack.c.l.b16 %v439
        %v975 = vunpack.c.l.b16 %v440
        %v976 = vunpack.c.l.b16 %v441
        %v977 = vunpack.c.l.b16 %v442
        %v978 = vunpack.c.l.b16 %v443
        %v979 = vunpack.c.l.b16 %v444
        %v980 = vunpack.c.l.b16 %v445
        %v981 = vunpack.c.l.b16 %v446
        %v982 = vunpack.c.l.b16 %v447
        %v983 = vunpack.c.l.b16 %v448
        %v984 = vunpack.c.l.b16 %v449
        %v985 = vunpack.c.l.b16 %v450
        %v986 = vunpack.c.l.b16 %v451
        %v987 = vunpack.c.l.b16 %v452
        %v988 = vunpack.c.l.b16 %v453
        %v989 = vunpack.c.l.b16 %v454
        %v990 = vunpack.c.l.b16 %v455
        %v991 = vunpack.c.l.b16 %v456
        %v992 = vunpack.c.l.b16 %v457
        %v993 = vunpack.c.l.b16 %v458
        %v994 = vunpack.c.l.b16 %v459
        %v995 = vunpack.c.l.b16 %v460
        %v996 = vunpack.c.l.b16 %v461
        %v997 = vunpack.c.l.b16 %v462
        %v998 = vpack.c.b16 %v743, %v742
        %v999 = vpack.c.b16 %v745, %v744
        %v1000 = vpack.c.b16 %v747, %v746
        %v1001 = vpack.c.b16 %v749, %v748
        %v1002 = vpack.c.b16 %v751, %v750
        %v1003 = vpack.c.b16 %v753, %v752
        %v1004 = vpack.c.b16 %v755, %v754
        %v1005 = vpack.c.b16 %v757, %v756
        %v1006 = vpack.c.b16 %v759, %v758
        %v1007 = vpack.c.b16 %v761, %v760
        %v1008 = vpack.c.b16 %v763, %v762
        %v1009 = vpack.c.b16 %v765, %v764
        %v1010 = vpack.c.b16 %v767, %v766
        %v1011 = vpack.c.b16 %v769, %v768
        %v1012 = vpack.c.b16 %v771, %v770
        %v1013 = vpack.c.b16 %v773, %v772
        %v1014 = vpack.c.b16 %v775, %v774
        %v1015 = vpack.c.b16 %v777, %v776
        %v1016 = vpack.c.b16 %v779, %v778
        %v1017 = vpack.c.b16 %v781, %v780
        %v1018 = vpack.c.b16 %v783, %v782
        %v1019 = vpack.c.b16 %v785, %v784
        %v1020 = vpack.c.b16 %v787, %v786
        %v1021 = vpack.c.b16 %v789, %v788
        %v1022 = vpack.c.b16 %v791, %v790
        %v1023 = vpack.c.b16 %v793, %v792
        %v1024 = vpack.c.b16 %v795, %v794
        %v1025 = vpack.c.b16 %v797, %v796
        %v1026 = vpack.c.b16 %v799, %v798
        %v1027 = vpack.c.b16 %v801, %v800
        %v1028 = vpack.c.b16 %v803, %v802
        %v1029 = vpack.c.b16 %v805, %v804
        %v1030 = vpack.c.b16 %v807, %v806
        %v1031 = vpack.c.b16 %v809, %v808
        %v1032 = vpack.c.b16 %v811, %v810
        %v1033 = vpack.c.b16 %v813, %v812
        %v1034 = vpack.c.b16 %v815, %v814
        %v1035 = vpack.c.b16 %v817, %v816
        %v1036 = vpack.c.b16 %v819, %v818
        %v1037 = vpack.c.b16 %v821, %v820
        %v1038 = vpack.c.b16 %v823, %v822
        %v1039 = vpack.c.b16 %v825, %v824
        %v1040 = vpack.c.b16 %v827, %v826
        %v1041 = vpack.c.b16 %v829, %v828
        %v1042 = vpack.c.b16 %v831, %v830
        %v1043 = vpack.c.b16 %v833, %v832
        %v1044 = vpack.c.b16 %v835, %v834
        %v1045 = vpack.c.b16 %v837, %v836
        %v1046 = vpack.c.b16 %v839, %v838
        %v1047 = vpack.c.b16 %v841, %v840
        %v1048 = vpack.c.b16 %v843, %v842
        %v1049 = vpack.c.b16 %v845, %v844
        %v1050 = vpack.c.b16 %v847, %v846
        %v1051 = vpack.c.b16 %v849, %v848
        %v1052 = vpack.c.b16 %v851, %v850
        %v1053 = vpack.c.b16 %v853, %v852
        %v1054 = vpack.c.b16 %v855, %v854
        %v1055 = vpack.c.b16 %v857, %v856
        %v1056 = vpack.c.b16 %v859, %v858
        %v1057 = vpack.c.b16 %v861, %v860
        %v1058 = vpack.c.b16 %v863, %v862
        %v1059 = vpack.c.b16 %v865, %v864
        %v1060 = vpack.c.b16 %v867, %v866
        %v1061 = vpack.c.b16 %v869, %v868
        %v1062 = vpack.c.b16 %v871, %v870
        %v1063 = vpack.c.b16 %v873, %v872
        %v1064 = vpack.c.b16 %v875, %v874
        %v1065 = vpack.c.b16 %v877, %v876
        %v1066 = vpack.c.b16 %v879, %v878
        %v1067 = vpack.c.b16 %v881, %v880
        %v1068 = vpack.c.b16 %v883, %v882
        %v1069 = vpack.c.b16 %v885, %v884
        %v1070 = vpack.c.b16 %v887, %v886
        %v1071 = vpack.c.b16 %v889, %v888
        %v1072 = vpack.c.b16 %v891, %v890
        %v1073 = vpack.c.b16 %v893, %v892
        %v1074 = vpack.c.b16 %v895, %v894
        %v1075 = vpack.c.b16 %v897, %v896
        %v1076 = vpack.c.b16 %v899, %v898
        %v1077 = vpack.c.b16 %v901, %v900
        %v1078 = vpack.c.b16 %v903, %v902
        %v1079 = vpack.c.b16 %v905, %v904
        %v1080 = vpack.c.b16 %v907, %v906
        %v1081 = vpack.c.b16 %v909, %v908
        %v1082 = vpack.c.b16 %v911, %v910
        %v1083 = vpack.c.b16 %v913, %v912
        %v1084 = vpack.c.b16 %v915, %v914
        %v1085 = vpack.c.b16 %v917, %v916
        %v1086 = vpack.c.b16 %v919, %v918
        %v1087 = vpack.c.b16 %v921, %v920
        %v1088 = vpack.c.b16 %v923, %v922
        %v1089 = vpack.c.b16 %v925, %v924
        %v1090 = vpack.c.b16 %v927, %v926
        %v1091 = vpack.c.b16 %v929, %v928
        %v1092 = vpack.c.b16 %v931, %v930
        %v1093 = vpack.c.b16 %v933, %v932
        %v1094 = vpack.c.b16 %v935, %v934
        %v1095 = vpack.c.b16 %v937, %v936
        %v1096 = vpack.c.b16 %v939, %v938
        %v1097 = vpack.c.b16 %v941, %v940
        %v1098 = vpack.c.b16 %v943, %v942
        %v1099 = vpack.c.b16 %v945, %v944
        %v1100 = vpack.c.b16 %v947, %v946
        %v1101 = vpack.c.b16 %v949, %v948
        %v1102 = vpack.c.b16 %v951, %v950
        %v1103 = vpack.c.b16 %v953, %v952
        %v1104 = vpack.c.b16 %v955, %v954
        %v1105 = vpack.c.b16 %v957, %v956
        %v1106 = vpack.c.b16 %v959, %v958
        %v1107 = vpack.c.b16 %v961, %v960
        %v1108 = vpack.c.b16 %v963, %v962
        %v1109 = vpack.c.b16 %v965, %v964
        %v1110 = vpack.c.b16 %v967, %v966
        %v1111 = vpack.c.b16 %v969, %v968
        %v1112 = vpack.c.b16 %v971, %v970
        %v1113 = vpack.c.b16 %v973, %v972
        %v1114 = vpack.c.b16 %v975, %v974
        %v1115 = vpack.c.b16 %v977, %v976
        %v1116 = vpack.c.b16 %v979, %v978
        %v1117 = vpack.c.b16 %v981, %v980
        %v1118 = vpack.c.b16 %v983, %v982
        %v1119 = vpack.c.b16 %v985, %v984
        %v1120 = vpack.c.b16 %v987, %v986
        %v1121 = vpack.c.b16 %v989, %v988
        %v1122 = vpack.c.b16 %v991, %v990
        %v1123 = vpack.c.b16 %v993, %v992
        %v1124 = vpack.c.b16 %v995, %v994
        %v1125 = vpack.c.b16 %v997, %v996
        %v1270 = vunpack.c.l.b16 %v463
        %v1271 = vunpack.c.l.b16 %v464
        %v1272 = vunpack.c.l.b16 %v465
        %v1273 = vunpack.c.l.b16 %v466
        %v1274 = vunpack.c.l.b16 %v467
        %v1275 = vunpack.c.l.b16 %v468
        %v1276 = vunpack.c.l.b16 %v469
        %v1277 = vunpack.c.l.b16 %v470
        %v1278 = vunpack.c.l.b16 %v471
        %v1279 = vunpack.c.l.b16 %v472
        %v1280 = vunpack.c.l.b16 %v473
        %v1281 = vunpack.c.l.b16 %v474
        %v1282 = vunpack.c.l.b16 %v475
        %v1283 = vunpack.c.l.b16 %v476
        %v1284 = vunpack.c.l.b16 %v477
        %v1285 = vunpack.c.l.b16 %v478
        %v1286 = vpack.c.b16 %v1271, %v1270
        %v1287 = vpack.c.b16 %v1273, %v1272
        %v1288 = vpack.c.b16 %v1275, %v1274
        %v1289 = vpack.c.b16 %v1277, %v1276
        %v1290 = vpack.c.b16 %v1279, %v1278
        %v1291 = vpack.c.b16 %v1281, %v1280
        %v1292 = vpack.c.b16 %v1283, %v1282
        %v1293 = vpack.c.b16 %v1285, %v1284
        %1302 = vmatprep.subr.bf16.mxu0 0
        %1303 = vmatpush1.bf16.msra.mxu0 %v1293
        %1304 = vmatprep.subr.bf16.mxu0 0
        %1305 = vmatpush1.bf16.msra.mxu0 %v1292
        %1306 = vmatprep.subr.bf16.mxu0 0
        %1307 = vmatpush1.bf16.msra.mxu0 %v1291
        %1308 = vmatprep.subr.bf16.mxu0 0
        %1309 = vmatpush1.bf16.msra.mxu0 %v1290
        %1310 = vmatprep.subr.bf16.mxu0 0
        %1311 = vmatpush1.bf16.msra.mxu0 %v1289
        %1312 = vmatprep.subr.bf16.mxu0 0
        %1313 = vmatpush1.bf16.msra.mxu0 %v1288
        %1314 = vmatprep.subr.bf16.mxu0 0
        %1315 = vmatpush1.bf16.msra.mxu0 %v1287
        %1316 = vmatprep.subr.bf16.mxu0 0
        %1317 = vmatpush1.bf16.msra.mxu0 %v1286
        %1318 = vmatprep.subr.bf16.mxu0 0
        %1319 = vmatpush2.bf16.msra.mxu0 0
        %1320 = vmatprep.subr.bf16.mxu0 0
        %1321 = vmatpush2.bf16.msra.mxu0 0
        %1322 = vmatprep.subr.bf16.mxu0 0
        %1323 = vmatpush2.bf16.msra.mxu0 0
        %1324 = vmatprep.subr.bf16.mxu0 0
        %1325 = vmatpush2.bf16.msra.mxu0 0
        %1326 = vmatprep.subr.bf16.mxu0 0
        %1327 = vmatpush2.bf16.msra.mxu0 0
        %1328 = vmatprep.subr.bf16.mxu0 0
        %1329 = vmatpush2.bf16.msra.mxu0 0
        %1330 = vmatprep.subr.bf16.mxu0 0
        %1331 = vmatpush2.bf16.msra.mxu0 0
        %1332 = vmatprep.subr.bf16.mxu0 0
        %1333 = vmatpush2.bf16.msra.mxu0 0
        %1334 = vmatprep.mubr.bf16.mxu0 0
        %1335 = vmatmul.mubr.bf16.gmra.mxu0 %v998
        %v1336 = vpop.f32.mrf.mxu0
        %v1337 = vadd.f32 %v484, %v1336
        %v1338 = vpop.f32.mrf.mxu0
        %v1339 = vpop.f32.mrf.mxu0
        %v1340 = vadd.f32 %v484, %v1339
        %v1341 = vpop.f32.mrf.mxu0
        %1342 = vmatprep.mubr.bf16.mxu0 0
        %1343 = vmatmul.mubr.bf16.gmra.mxu0 %v999
        %v1344 = vpop.f32.mrf.mxu0
        %v1345 = vadd.f32 %v484, %v1344
        %v1346 = vpop.f32.mrf.mxu0
        %v1347 = vpop.f32.mrf.mxu0
        %v1348 = vadd.f32 %v484, %v1347
        %v1349 = vpop.f32.mrf.mxu0
        %1350 = vmatprep.mubr.bf16.mxu0 0
        %1351 = vmatmul.mubr.bf16.gmra.mxu0 %v1000
        %v1352 = vpop.f32.mrf.mxu0
        %v1353 = vadd.f32 %v484, %v1352
        %v1354 = vpop.f32.mrf.mxu0
        %v1355 = vpop.f32.mrf.mxu0
        %v1356 = vadd.f32 %v484, %v1355
        %v1357 = vpop.f32.mrf.mxu0
        %1358 = vmatprep.mubr.bf16.mxu0 0
        %1359 = vmatmul.mubr.bf16.gmra.mxu0 %v1001
        %v1360 = vpop.f32.mrf.mxu0
        %v1361 = vadd.f32 %v484, %v1360
        %v1362 = vpop.f32.mrf.mxu0
        %v1363 = vpop.f32.mrf.mxu0
        %v1364 = vadd.f32 %v484, %v1363
        %v1365 = vpop.f32.mrf.mxu0
        %1366 = vmatprep.mubr.bf16.mxu0 0
        %1367 = vmatmul.mubr.bf16.gmra.mxu0 %v1002
        %v1368 = vpop.f32.mrf.mxu0
        %v1369 = vadd.f32 %v484, %v1368
        %v1370 = vpop.f32.mrf.mxu0
        %v1371 = vpop.f32.mrf.mxu0
        %v1372 = vadd.f32 %v484, %v1371
        %v1373 = vpop.f32.mrf.mxu0
        %1374 = vmatprep.mubr.bf16.mxu0 0
        %1375 = vmatmul.mubr.bf16.gmra.mxu0 %v1003
        %v1376 = vpop.f32.mrf.mxu0
        %v1377 = vadd.f32 %v484, %v1376
        %v1378 = vpop.f32.mrf.mxu0
        %v1379 = vpop.f32.mrf.mxu0
        %v1380 = vadd.f32 %v484, %v1379
        %v1381 = vpop.f32.mrf.mxu0
        %1382 = vmatprep.mubr.bf16.mxu0 0
        %1383 = vmatmul.mubr.bf16.gmra.mxu0 %v1004
        %v1384 = vpop.f32.mrf.mxu0
        %v1385 = vadd.f32 %v484, %v1384
        %v1386 = vpop.f32.mrf.mxu0
        %v1387 = vpop.f32.mrf.mxu0
        %v1388 = vadd.f32 %v484, %v1387
        %v1389 = vpop.f32.mrf.mxu0
        %1390 = vmatprep.mubr.bf16.mxu0 0
        %1391 = vmatmul.mubr.bf16.gmra.mxu0 %v1005
        %v1392 = vpop.f32.mrf.mxu0
        %v1393 = vadd.f32 %v484, %v1392
        %v1394 = vpop.f32.mrf.mxu0
        %v1395 = vpop.f32.mrf.mxu0
        %v1396 = vadd.f32 %v484, %v1395
        %v1397 = vpop.f32.mrf.mxu0
        %1398 = vmatprep.mubr.bf16.mxu0 0
        %1399 = vmatmul.mubr.bf16.gmra.mxu0 %v1006
        %v1400 = vpop.f32.mrf.mxu0
        %v1401 = vadd.f32 %v484, %v1400
        %v1402 = vpop.f32.mrf.mxu0
        %v1403 = vpop.f32.mrf.mxu0
        %v1404 = vadd.f32 %v484, %v1403
        %v1405 = vpop.f32.mrf.mxu0
        %1406 = vmatprep.mubr.bf16.mxu0 0
        %1407 = vmatmul.mubr.bf16.gmra.mxu0 %v1007
        %v1408 = vpop.f32.mrf.mxu0
        %v1409 = vadd.f32 %v484, %v1408
        %v1410 = vpop.f32.mrf.mxu0
        %v1411 = vpop.f32.mrf.mxu0
        %v1412 = vadd.f32 %v484, %v1411
        %v1413 = vpop.f32.mrf.mxu0
        %1414 = vmatprep.mubr.bf16.mxu0 0
        %1415 = vmatmul.mubr.bf16.gmra.mxu0 %v1008
        %v1416 = vpop.f32.mrf.mxu0
        %v1417 = vadd.f32 %v484, %v1416
        %v1418 = vpop.f32.mrf.mxu0
        %v1419 = vpop.f32.mrf.mxu0
        %v1420 = vadd.f32 %v484, %v1419
        %v1421 = vpop.f32.mrf.mxu0
        %1422 = vmatprep.mubr.bf16.mxu0 0
        %1423 = vmatmul.mubr.bf16.gmra.mxu0 %v1009
        %v1424 = vpop.f32.mrf.mxu0
        %v1425 = vadd.f32 %v484, %v1424
        %v1426 = vpop.f32.mrf.mxu0
        %v1427 = vpop.f32.mrf.mxu0
        %v1428 = vadd.f32 %v484, %v1427
        %v1429 = vpop.f32.mrf.mxu0
        %1430 = vmatprep.mubr.bf16.mxu0 0
        %1431 = vmatmul.mubr.bf16.gmra.mxu0 %v1010
        %v1432 = vpop.f32.mrf.mxu0
        %v1433 = vadd.f32 %v484, %v1432
        %v1434 = vpop.f32.mrf.mxu0
        %v1435 = vpop.f32.mrf.mxu0
        %v1436 = vadd.f32 %v484, %v1435
        %v1437 = vpop.f32.mrf.mxu0
        %1438 = vmatprep.mubr.bf16.mxu0 0
        %1439 = vmatmul.mubr.bf16.gmra.mxu0 %v1011
        %v1440 = vpop.f32.mrf.mxu0
        %v1441 = vadd.f32 %v484, %v1440
        %v1442 = vpop.f32.mrf.mxu0
        %v1443 = vpop.f32.mrf.mxu0
        %v1444 = vadd.f32 %v484, %v1443
        %v1445 = vpop.f32.mrf.mxu0
        %1446 = vmatprep.mubr.bf16.mxu0 0
        %1447 = vmatmul.mubr.bf16.gmra.mxu0 %v1012
        %v1448 = vpop.f32.mrf.mxu0
        %v1449 = vadd.f32 %v484, %v1448
        %v1450 = vpop.f32.mrf.mxu0
        %v1451 = vpop.f32.mrf.mxu0
        %v1452 = vadd.f32 %v484, %v1451
        %v1453 = vpop.f32.mrf.mxu0
        %1454 = vmatprep.mubr.bf16.mxu0 0
        %1455 = vmatmul.mubr.bf16.gmra.mxu0 %v1013
        %v1456 = vpop.f32.mrf.mxu0
        %v1457 = vadd.f32 %v484, %v1456
        %v1458 = vpop.f32.mrf.mxu0
        %v1459 = vpop.f32.mrf.mxu0
        %v1460 = vadd.f32 %v484, %v1459
        %v1461 = vpop.f32.mrf.mxu0
        %1462 = vmatprep.mubr.bf16.mxu0 0
        %1463 = vmatmul.mubr.bf16.gmra.mxu0 %v1014
        %v1464 = vpop.f32.mrf.mxu0
        %v1465 = vadd.f32 %v484, %v1464
        %v1466 = vpop.f32.mrf.mxu0
        %v1467 = vpop.f32.mrf.mxu0
        %v1468 = vadd.f32 %v484, %v1467
        %v1469 = vpop.f32.mrf.mxu0
        %1470 = vmatprep.mubr.bf16.mxu0 0
        %1471 = vmatmul.mubr.bf16.gmra.mxu0 %v1015
        %v1472 = vpop.f32.mrf.mxu0
        %v1473 = vadd.f32 %v484, %v1472
        %v1474 = vpop.f32.mrf.mxu0
        %v1475 = vpop.f32.mrf.mxu0
        %v1476 = vadd.f32 %v484, %v1475
        %v1477 = vpop.f32.mrf.mxu0
        %1478 = vmatprep.mubr.bf16.mxu0 0
        %1479 = vmatmul.mubr.bf16.gmra.mxu0 %v1016
        %v1480 = vpop.f32.mrf.mxu0
        %v1481 = vadd.f32 %v484, %v1480
        %v1482 = vpop.f32.mrf.mxu0
        %v1483 = vpop.f32.mrf.mxu0
        %v1484 = vadd.f32 %v484, %v1483
        %v1485 = vpop.f32.mrf.mxu0
        %1486 = vmatprep.mubr.bf16.mxu0 0
        %1487 = vmatmul.mubr.bf16.gmra.mxu0 %v1017
        %v1488 = vpop.f32.mrf.mxu0
        %v1489 = vadd.f32 %v484, %v1488
        %v1490 = vpop.f32.mrf.mxu0
        %v1491 = vpop.f32.mrf.mxu0
        %v1492 = vadd.f32 %v484, %v1491
        %v1493 = vpop.f32.mrf.mxu0
        %1494 = vmatprep.mubr.bf16.mxu0 0
        %1495 = vmatmul.mubr.bf16.gmra.mxu0 %v1018
        %v1496 = vpop.f32.mrf.mxu0
        %v1497 = vadd.f32 %v484, %v1496
        %v1498 = vpop.f32.mrf.mxu0
        %v1499 = vpop.f32.mrf.mxu0
        %v1500 = vadd.f32 %v484, %v1499
        %v1501 = vpop.f32.mrf.mxu0
        %1502 = vmatprep.mubr.bf16.mxu0 0
        %1503 = vmatmul.mubr.bf16.gmra.mxu0 %v1019
        %v1504 = vpop.f32.mrf.mxu0
        %v1505 = vadd.f32 %v484, %v1504
        %v1506 = vpop.f32.mrf.mxu0
        %v1507 = vpop.f32.mrf.mxu0
        %v1508 = vadd.f32 %v484, %v1507
        %v1509 = vpop.f32.mrf.mxu0
        %1510 = vmatprep.mubr.bf16.mxu0 0
        %1511 = vmatmul.mubr.bf16.gmra.mxu0 %v1020
        %v1512 = vpop.f32.mrf.mxu0
        %v1513 = vadd.f32 %v484, %v1512
        %v1514 = vpop.f32.mrf.mxu0
        %v1515 = vpop.f32.mrf.mxu0
        %v1516 = vadd.f32 %v484, %v1515
        %v1517 = vpop.f32.mrf.mxu0
        %1518 = vmatprep.mubr.bf16.mxu0 0
        %1519 = vmatmul.mubr.bf16.gmra.mxu0 %v1021
        %v1520 = vpop.f32.mrf.mxu0
        %v1521 = vadd.f32 %v484, %v1520
        %v1522 = vpop.f32.mrf.mxu0
        %v1523 = vpop.f32.mrf.mxu0
        %v1524 = vadd.f32 %v484, %v1523
        %v1525 = vpop.f32.mrf.mxu0
        %1526 = vmatprep.mubr.bf16.mxu0 0
        %1527 = vmatmul.mubr.bf16.gmra.mxu0 %v1022
        %v1528 = vpop.f32.mrf.mxu0
        %v1529 = vadd.f32 %v484, %v1528
        %v1530 = vpop.f32.mrf.mxu0
        %v1531 = vpop.f32.mrf.mxu0
        %v1532 = vadd.f32 %v484, %v1531
        %v1533 = vpop.f32.mrf.mxu0
        %1534 = vmatprep.mubr.bf16.mxu0 0
        %1535 = vmatmul.mubr.bf16.gmra.mxu0 %v1023
        %v1536 = vpop.f32.mrf.mxu0
        %v1537 = vadd.f32 %v484, %v1536
        %v1538 = vpop.f32.mrf.mxu0
        %v1539 = vpop.f32.mrf.mxu0
        %v1540 = vadd.f32 %v484, %v1539
        %v1541 = vpop.f32.mrf.mxu0
        %1542 = vmatprep.mubr.bf16.mxu0 0
        %1543 = vmatmul.mubr.bf16.gmra.mxu0 %v1024
        %v1544 = vpop.f32.mrf.mxu0
        %v1545 = vadd.f32 %v484, %v1544
        %v1546 = vpop.f32.mrf.mxu0
        %v1547 = vpop.f32.mrf.mxu0
        %v1548 = vadd.f32 %v484, %v1547
        %v1549 = vpop.f32.mrf.mxu0
        %1550 = vmatprep.mubr.bf16.mxu0 0
        %1551 = vmatmul.mubr.bf16.gmra.mxu0 %v1025
        %v1552 = vpop.f32.mrf.mxu0
        %v1553 = vadd.f32 %v484, %v1552
        %v1554 = vpop.f32.mrf.mxu0
        %v1555 = vpop.f32.mrf.mxu0
        %v1556 = vadd.f32 %v484, %v1555
        %v1557 = vpop.f32.mrf.mxu0
        %1558 = vmatprep.mubr.bf16.mxu0 0
        %1559 = vmatmul.mubr.bf16.gmra.mxu0 %v1026
        %v1560 = vpop.f32.mrf.mxu0
        %v1561 = vadd.f32 %v484, %v1560
        %v1562 = vpop.f32.mrf.mxu0
        %v1563 = vpop.f32.mrf.mxu0
        %v1564 = vadd.f32 %v484, %v1563
        %v1565 = vpop.f32.mrf.mxu0
        %1566 = vmatprep.mubr.bf16.mxu0 0
        %1567 = vmatmul.mubr.bf16.gmra.mxu0 %v1027
        %v1568 = vpop.f32.mrf.mxu0
        %v1569 = vadd.f32 %v484, %v1568
        %v1570 = vpop.f32.mrf.mxu0
        %v1571 = vpop.f32.mrf.mxu0
        %v1572 = vadd.f32 %v484, %v1571
        %v1573 = vpop.f32.mrf.mxu0
        %1574 = vmatprep.mubr.bf16.mxu0 0
        %1575 = vmatmul.mubr.bf16.gmra.mxu0 %v1028
        %v1576 = vpop.f32.mrf.mxu0
        %v1577 = vadd.f32 %v484, %v1576
        %v1578 = vpop.f32.mrf.mxu0
        %v1579 = vpop.f32.mrf.mxu0
        %v1580 = vadd.f32 %v484, %v1579
        %v1581 = vpop.f32.mrf.mxu0
        %1582 = vmatprep.mubr.bf16.mxu0 0
        %1583 = vmatmul.mubr.bf16.gmra.mxu0 %v1029
        %v1584 = vpop.f32.mrf.mxu0
        %v1585 = vadd.f32 %v484, %v1584
        %v1586 = vpop.f32.mrf.mxu0
        %v1587 = vpop.f32.mrf.mxu0
        %v1588 = vadd.f32 %v484, %v1587
        %v1589 = vpop.f32.mrf.mxu0
        %1590 = vmatprep.mubr.bf16.mxu0 0
        %1591 = vmatmul.mubr.bf16.gmra.mxu0 %v1030
        %v1592 = vpop.f32.mrf.mxu0
        %v1593 = vadd.f32 %v484, %v1592
        %v1594 = vpop.f32.mrf.mxu0
        %v1595 = vpop.f32.mrf.mxu0
        %v1596 = vadd.f32 %v484, %v1595
        %v1597 = vpop.f32.mrf.mxu0
        %1598 = vmatprep.mubr.bf16.mxu0 0
        %1599 = vmatmul.mubr.bf16.gmra.mxu0 %v1031
        %v1600 = vpop.f32.mrf.mxu0
        %v1601 = vadd.f32 %v484, %v1600
        %v1602 = vpop.f32.mrf.mxu0
        %v1603 = vpop.f32.mrf.mxu0
        %v1604 = vadd.f32 %v484, %v1603
        %v1605 = vpop.f32.mrf.mxu0
        %1606 = vmatprep.mubr.bf16.mxu0 0
        %1607 = vmatmul.mubr.bf16.gmra.mxu0 %v1032
        %v1608 = vpop.f32.mrf.mxu0
        %v1609 = vadd.f32 %v484, %v1608
        %v1610 = vpop.f32.mrf.mxu0
        %v1611 = vpop.f32.mrf.mxu0
        %v1612 = vadd.f32 %v484, %v1611
        %v1613 = vpop.f32.mrf.mxu0
        %1614 = vmatprep.mubr.bf16.mxu0 0
        %1615 = vmatmul.mubr.bf16.gmra.mxu0 %v1033
        %v1616 = vpop.f32.mrf.mxu0
        %v1617 = vadd.f32 %v484, %v1616
        %v1618 = vpop.f32.mrf.mxu0
        %v1619 = vpop.f32.mrf.mxu0
        %v1620 = vadd.f32 %v484, %v1619
        %v1621 = vpop.f32.mrf.mxu0
        %1622 = vmatprep.mubr.bf16.mxu0 0
        %1623 = vmatmul.mubr.bf16.gmra.mxu0 %v1034
        %v1624 = vpop.f32.mrf.mxu0
        %v1625 = vadd.f32 %v484, %v1624
        %v1626 = vpop.f32.mrf.mxu0
        %v1627 = vpop.f32.mrf.mxu0
        %v1628 = vadd.f32 %v484, %v1627
        %v1629 = vpop.f32.mrf.mxu0
        %1630 = vmatprep.mubr.bf16.mxu0 0
        %1631 = vmatmul.mubr.bf16.gmra.mxu0 %v1035
        %v1632 = vpop.f32.mrf.mxu0
        %v1633 = vadd.f32 %v484, %v1632
        %v1634 = vpop.f32.mrf.mxu0
        %v1635 = vpop.f32.mrf.mxu0
        %v1636 = vadd.f32 %v484, %v1635
        %v1637 = vpop.f32.mrf.mxu0
        %1638 = vmatprep.mubr.bf16.mxu0 0
        %1639 = vmatmul.mubr.bf16.gmra.mxu0 %v1036
        %v1640 = vpop.f32.mrf.mxu0
        %v1641 = vadd.f32 %v484, %v1640
        %v1642 = vpop.f32.mrf.mxu0
        %v1643 = vpop.f32.mrf.mxu0
        %v1644 = vadd.f32 %v484, %v1643
        %v1645 = vpop.f32.mrf.mxu0
        %1646 = vmatprep.mubr.bf16.mxu0 0
        %1647 = vmatmul.mubr.bf16.gmra.mxu0 %v1037
        %v1648 = vpop.f32.mrf.mxu0
        %v1649 = vadd.f32 %v484, %v1648
        %v1650 = vpop.f32.mrf.mxu0
        %v1651 = vpop.f32.mrf.mxu0
        %v1652 = vadd.f32 %v484, %v1651
        %v1653 = vpop.f32.mrf.mxu0
        %1654 = vmatprep.mubr.bf16.mxu0 0
        %1655 = vmatmul.mubr.bf16.gmra.mxu0 %v1038
        %v1656 = vpop.f32.mrf.mxu0
        %v1657 = vadd.f32 %v484, %v1656
        %v1658 = vpop.f32.mrf.mxu0
        %v1659 = vpop.f32.mrf.mxu0
        %v1660 = vadd.f32 %v484, %v1659
        %v1661 = vpop.f32.mrf.mxu0
        %1662 = vmatprep.mubr.bf16.mxu0 0
        %1663 = vmatmul.mubr.bf16.gmra.mxu0 %v1039
        %v1664 = vpop.f32.mrf.mxu0
        %v1665 = vadd.f32 %v484, %v1664
        %v1666 = vpop.f32.mrf.mxu0
        %v1667 = vpop.f32.mrf.mxu0
        %v1668 = vadd.f32 %v484, %v1667
        %v1669 = vpop.f32.mrf.mxu0
        %1670 = vmatprep.mubr.bf16.mxu0 0
        %1671 = vmatmul.mubr.bf16.gmra.mxu0 %v1040
        %v1672 = vpop.f32.mrf.mxu0
        %v1673 = vadd.f32 %v484, %v1672
        %v1674 = vpop.f32.mrf.mxu0
        %v1675 = vpop.f32.mrf.mxu0
        %v1676 = vadd.f32 %v484, %v1675
        %v1677 = vpop.f32.mrf.mxu0
        %1678 = vmatprep.mubr.bf16.mxu0 0
        %1679 = vmatmul.mubr.bf16.gmra.mxu0 %v1041
        %v1680 = vpop.f32.mrf.mxu0
        %v1681 = vadd.f32 %v484, %v1680
        %v1682 = vpop.f32.mrf.mxu0
        %v1683 = vpop.f32.mrf.mxu0
        %v1684 = vadd.f32 %v484, %v1683
        %v1685 = vpop.f32.mrf.mxu0
        %1686 = vmatprep.mubr.bf16.mxu0 0
        %1687 = vmatmul.mubr.bf16.gmra.mxu0 %v1042
        %v1688 = vpop.f32.mrf.mxu0
        %v1689 = vadd.f32 %v484, %v1688
        %v1690 = vpop.f32.mrf.mxu0
        %v1691 = vpop.f32.mrf.mxu0
        %v1692 = vadd.f32 %v484, %v1691
        %v1693 = vpop.f32.mrf.mxu0
        %1694 = vmatprep.mubr.bf16.mxu0 0
        %1695 = vmatmul.mubr.bf16.gmra.mxu0 %v1043
        %v1696 = vpop.f32.mrf.mxu0
        %v1697 = vadd.f32 %v484, %v1696
        %v1698 = vpop.f32.mrf.mxu0
        %v1699 = vpop.f32.mrf.mxu0
        %v1700 = vadd.f32 %v484, %v1699
        %v1701 = vpop.f32.mrf.mxu0
        %1702 = vmatprep.mubr.bf16.mxu0 0
        %1703 = vmatmul.mubr.bf16.gmra.mxu0 %v1044
        %v1704 = vpop.f32.mrf.mxu0
        %v1705 = vadd.f32 %v484, %v1704
        %v1706 = vpop.f32.mrf.mxu0
        %v1707 = vpop.f32.mrf.mxu0
        %v1708 = vadd.f32 %v484, %v1707
        %v1709 = vpop.f32.mrf.mxu0
        %1710 = vmatprep.mubr.bf16.mxu0 0
        %1711 = vmatmul.mubr.bf16.gmra.mxu0 %v1045
        %v1712 = vpop.f32.mrf.mxu0
        %v1713 = vadd.f32 %v484, %v1712
        %v1714 = vpop.f32.mrf.mxu0
        %v1715 = vpop.f32.mrf.mxu0
        %v1716 = vadd.f32 %v484, %v1715
        %v1717 = vpop.f32.mrf.mxu0
        %1718 = vmatprep.mubr.bf16.mxu0 0
        %1719 = vmatmul.mubr.bf16.gmra.mxu0 %v1046
        %v1720 = vpop.f32.mrf.mxu0
        %v1721 = vadd.f32 %v484, %v1720
        %v1722 = vpop.f32.mrf.mxu0
        %v1723 = vpop.f32.mrf.mxu0
        %v1724 = vadd.f32 %v484, %v1723
        %v1725 = vpop.f32.mrf.mxu0
        %1726 = vmatprep.mubr.bf16.mxu0 0
        %1727 = vmatmul.mubr.bf16.gmra.mxu0 %v1047
        %v1728 = vpop.f32.mrf.mxu0
        %v1729 = vadd.f32 %v484, %v1728
        %v1730 = vpop.f32.mrf.mxu0
        %v1731 = vpop.f32.mrf.mxu0
        %v1732 = vadd.f32 %v484, %v1731
        %v1733 = vpop.f32.mrf.mxu0
        %1734 = vmatprep.mubr.bf16.mxu0 0
        %1735 = vmatmul.mubr.bf16.gmra.mxu0 %v1048
        %v1736 = vpop.f32.mrf.mxu0
        %v1737 = vadd.f32 %v484, %v1736
        %v1738 = vpop.f32.mrf.mxu0
        %v1739 = vpop.f32.mrf.mxu0
        %v1740 = vadd.f32 %v484, %v1739
        %v1741 = vpop.f32.mrf.mxu0
        %1742 = vmatprep.mubr.bf16.mxu0 0
        %1743 = vmatmul.mubr.bf16.gmra.mxu0 %v1049
        %v1744 = vpop.f32.mrf.mxu0
        %v1745 = vadd.f32 %v484, %v1744
        %v1746 = vpop.f32.mrf.mxu0
        %v1747 = vpop.f32.mrf.mxu0
        %v1748 = vadd.f32 %v484, %v1747
        %v1749 = vpop.f32.mrf.mxu0
        %1750 = vmatprep.mubr.bf16.mxu0 0
        %1751 = vmatmul.mubr.bf16.gmra.mxu0 %v1050
        %v1752 = vpop.f32.mrf.mxu0
        %v1753 = vadd.f32 %v484, %v1752
        %v1754 = vpop.f32.mrf.mxu0
        %v1755 = vpop.f32.mrf.mxu0
        %v1756 = vadd.f32 %v484, %v1755
        %v1757 = vpop.f32.mrf.mxu0
        %1758 = vmatprep.mubr.bf16.mxu0 0
        %1759 = vmatmul.mubr.bf16.gmra.mxu0 %v1051
        %v1760 = vpop.f32.mrf.mxu0
        %v1761 = vadd.f32 %v484, %v1760
        %v1762 = vpop.f32.mrf.mxu0
        %v1763 = vpop.f32.mrf.mxu0
        %v1764 = vadd.f32 %v484, %v1763
        %v1765 = vpop.f32.mrf.mxu0
        %1766 = vmatprep.mubr.bf16.mxu0 0
        %1767 = vmatmul.mubr.bf16.gmra.mxu0 %v1052
        %v1768 = vpop.f32.mrf.mxu0
        %v1769 = vadd.f32 %v484, %v1768
        %v1770 = vpop.f32.mrf.mxu0
        %v1771 = vpop.f32.mrf.mxu0
        %v1772 = vadd.f32 %v484, %v1771
        %v1773 = vpop.f32.mrf.mxu0
        %1774 = vmatprep.mubr.bf16.mxu0 0
        %1775 = vmatmul.mubr.bf16.gmra.mxu0 %v1053
        %v1776 = vpop.f32.mrf.mxu0
        %v1777 = vadd.f32 %v484, %v1776
        %v1778 = vpop.f32.mrf.mxu0
        %v1779 = vpop.f32.mrf.mxu0
        %v1780 = vadd.f32 %v484, %v1779
        %v1781 = vpop.f32.mrf.mxu0
        %1782 = vmatprep.mubr.bf16.mxu0 0
        %1783 = vmatmul.mubr.bf16.gmra.mxu0 %v1054
        %v1784 = vpop.f32.mrf.mxu0
        %v1785 = vadd.f32 %v484, %v1784
        %v1786 = vpop.f32.mrf.mxu0
        %v1787 = vpop.f32.mrf.mxu0
        %v1788 = vadd.f32 %v484, %v1787
        %v1789 = vpop.f32.mrf.mxu0
        %1790 = vmatprep.mubr.bf16.mxu0 0
        %1791 = vmatmul.mubr.bf16.gmra.mxu0 %v1055
        %v1792 = vpop.f32.mrf.mxu0
        %v1793 = vadd.f32 %v484, %v1792
        %v1794 = vpop.f32.mrf.mxu0
        %v1795 = vpop.f32.mrf.mxu0
        %v1796 = vadd.f32 %v484, %v1795
        %v1797 = vpop.f32.mrf.mxu0
        %1798 = vmatprep.mubr.bf16.mxu0 0
        %1799 = vmatmul.mubr.bf16.gmra.mxu0 %v1056
        %v1800 = vpop.f32.mrf.mxu0
        %v1801 = vadd.f32 %v484, %v1800
        %v1802 = vpop.f32.mrf.mxu0
        %v1803 = vpop.f32.mrf.mxu0
        %v1804 = vadd.f32 %v484, %v1803
        %v1805 = vpop.f32.mrf.mxu0
        %1806 = vmatprep.mubr.bf16.mxu0 0
        %1807 = vmatmul.mubr.bf16.gmra.mxu0 %v1057
        %v1808 = vpop.f32.mrf.mxu0
        %v1809 = vadd.f32 %v484, %v1808
        %v1810 = vpop.f32.mrf.mxu0
        %v1811 = vpop.f32.mrf.mxu0
        %v1812 = vadd.f32 %v484, %v1811
        %v1813 = vpop.f32.mrf.mxu0
        %1814 = vmatprep.mubr.bf16.mxu0 0
        %1815 = vmatmul.mubr.bf16.gmra.mxu0 %v1058
        %v1816 = vpop.f32.mrf.mxu0
        %v1817 = vadd.f32 %v484, %v1816
        %v1818 = vpop.f32.mrf.mxu0
        %v1819 = vpop.f32.mrf.mxu0
        %v1820 = vadd.f32 %v484, %v1819
        %v1821 = vpop.f32.mrf.mxu0
        %1822 = vmatprep.mubr.bf16.mxu0 0
        %1823 = vmatmul.mubr.bf16.gmra.mxu0 %v1059
        %v1824 = vpop.f32.mrf.mxu0
        %v1825 = vadd.f32 %v484, %v1824
        %v1826 = vpop.f32.mrf.mxu0
        %v1827 = vpop.f32.mrf.mxu0
        %v1828 = vadd.f32 %v484, %v1827
        %v1829 = vpop.f32.mrf.mxu0
        %1830 = vmatprep.mubr.bf16.mxu0 0
        %1831 = vmatmul.mubr.bf16.gmra.mxu0 %v1060
        %v1832 = vpop.f32.mrf.mxu0
        %v1833 = vadd.f32 %v484, %v1832
        %v1834 = vpop.f32.mrf.mxu0
        %v1835 = vpop.f32.mrf.mxu0
        %v1836 = vadd.f32 %v484, %v1835
        %v1837 = vpop.f32.mrf.mxu0
        %1838 = vmatprep.mubr.bf16.mxu0 0
        %1839 = vmatmul.mubr.bf16.gmra.mxu0 %v1061
        %v1840 = vpop.f32.mrf.mxu0
        %v1841 = vadd.f32 %v484, %v1840
        %v1842 = vpop.f32.mrf.mxu0
        %v1843 = vpop.f32.mrf.mxu0
        %v1844 = vadd.f32 %v484, %v1843
        %v1845 = vpop.f32.mrf.mxu0
        %1846 = vmatprep.mubr.bf16.mxu0 0
        %1847 = vmatmul.mubr.bf16.gmra.mxu0 %v1062
        %v1848 = vpop.f32.mrf.mxu0
        %v1849 = vadd.f32 %v484, %v1848
        %v1850 = vpop.f32.mrf.mxu0
        %v1851 = vpop.f32.mrf.mxu0
        %v1852 = vadd.f32 %v484, %v1851
        %v1853 = vpop.f32.mrf.mxu0
        %1854 = vmatprep.mubr.bf16.mxu0 0
        %1855 = vmatmul.mubr.bf16.gmra.mxu0 %v1063
        %v1856 = vpop.f32.mrf.mxu0
        %v1857 = vadd.f32 %v484, %v1856
        %v1858 = vpop.f32.mrf.mxu0
        %v1859 = vpop.f32.mrf.mxu0
        %v1860 = vadd.f32 %v484, %v1859
        %v1861 = vpop.f32.mrf.mxu0
        %1862 = vmatprep.mubr.bf16.mxu0 0
        %1863 = vmatmul.mubr.bf16.gmra.mxu0 %v1064
        %v1864 = vpop.f32.mrf.mxu0
        %v1865 = vadd.f32 %v484, %v1864
        %v1866 = vpop.f32.mrf.mxu0
        %v1867 = vpop.f32.mrf.mxu0
        %v1868 = vadd.f32 %v484, %v1867
        %v1869 = vpop.f32.mrf.mxu0
        %1870 = vmatprep.mubr.bf16.mxu0 0
        %1871 = vmatmul.mubr.bf16.gmra.mxu0 %v1065
        %v1872 = vpop.f32.mrf.mxu0
        %v1873 = vadd.f32 %v484, %v1872
        %v1874 = vpop.f32.mrf.mxu0
        %v1875 = vpop.f32.mrf.mxu0
        %v1876 = vadd.f32 %v484, %v1875
        %v1877 = vpop.f32.mrf.mxu0
        %1878 = vmatprep.mubr.bf16.mxu0 0
        %1879 = vmatmul.mubr.bf16.gmra.mxu0 %v1066
        %v1880 = vpop.f32.mrf.mxu0
        %v1881 = vadd.f32 %v484, %v1880
        %v1882 = vpop.f32.mrf.mxu0
        %v1883 = vpop.f32.mrf.mxu0
        %v1884 = vadd.f32 %v484, %v1883
        %v1885 = vpop.f32.mrf.mxu0
        %1886 = vmatprep.mubr.bf16.mxu0 0
        %1887 = vmatmul.mubr.bf16.gmra.mxu0 %v1067
        %v1888 = vpop.f32.mrf.mxu0
        %v1889 = vadd.f32 %v484, %v1888
        %v1890 = vpop.f32.mrf.mxu0
        %v1891 = vpop.f32.mrf.mxu0
        %v1892 = vadd.f32 %v484, %v1891
        %v1893 = vpop.f32.mrf.mxu0
        %1894 = vmatprep.mubr.bf16.mxu0 0
        %1895 = vmatmul.mubr.bf16.gmra.mxu0 %v1068
        %v1896 = vpop.f32.mrf.mxu0
        %v1897 = vadd.f32 %v484, %v1896
        %v1898 = vpop.f32.mrf.mxu0
        %v1899 = vpop.f32.mrf.mxu0
        %v1900 = vadd.f32 %v484, %v1899
        %v1901 = vpop.f32.mrf.mxu0
        %1902 = vmatprep.mubr.bf16.mxu0 0
        %1903 = vmatmul.mubr.bf16.gmra.mxu0 %v1069
        %v1904 = vpop.f32.mrf.mxu0
        %v1905 = vadd.f32 %v484, %v1904
        %v1906 = vpop.f32.mrf.mxu0
        %v1907 = vpop.f32.mrf.mxu0
        %v1908 = vadd.f32 %v484, %v1907
        %v1909 = vpop.f32.mrf.mxu0
        %1910 = vmatprep.mubr.bf16.mxu0 0
        %1911 = vmatmul.mubr.bf16.gmra.mxu0 %v1070
        %v1912 = vpop.f32.mrf.mxu0
        %v1913 = vadd.f32 %v484, %v1912
        %v1914 = vpop.f32.mrf.mxu0
        %v1915 = vpop.f32.mrf.mxu0
        %v1916 = vadd.f32 %v484, %v1915
        %v1917 = vpop.f32.mrf.mxu0
        %1918 = vmatprep.mubr.bf16.mxu0 0
        %1919 = vmatmul.mubr.bf16.gmra.mxu0 %v1071
        %v1920 = vpop.f32.mrf.mxu0
        %v1921 = vadd.f32 %v484, %v1920
        %v1922 = vpop.f32.mrf.mxu0
        %v1923 = vpop.f32.mrf.mxu0
        %v1924 = vadd.f32 %v484, %v1923
        %v1925 = vpop.f32.mrf.mxu0
        %1926 = vmatprep.mubr.bf16.mxu0 0
        %1927 = vmatmul.mubr.bf16.gmra.mxu0 %v1072
        %v1928 = vpop.f32.mrf.mxu0
        %v1929 = vadd.f32 %v484, %v1928
        %v1930 = vpop.f32.mrf.mxu0
        %v1931 = vpop.f32.mrf.mxu0
        %v1932 = vadd.f32 %v484, %v1931
        %v1933 = vpop.f32.mrf.mxu0
        %1934 = vmatprep.mubr.bf16.mxu0 0
        %1935 = vmatmul.mubr.bf16.gmra.mxu0 %v1073
        %v1936 = vpop.f32.mrf.mxu0
        %v1937 = vadd.f32 %v484, %v1936
        %v1938 = vpop.f32.mrf.mxu0
        %v1939 = vpop.f32.mrf.mxu0
        %v1940 = vadd.f32 %v484, %v1939
        %v1941 = vpop.f32.mrf.mxu0
        %1942 = vmatprep.mubr.bf16.mxu0 0
        %1943 = vmatmul.mubr.bf16.gmra.mxu0 %v1074
        %v1944 = vpop.f32.mrf.mxu0
        %v1945 = vadd.f32 %v484, %v1944
        %v1946 = vpop.f32.mrf.mxu0
        %v1947 = vpop.f32.mrf.mxu0
        %v1948 = vadd.f32 %v484, %v1947
        %v1949 = vpop.f32.mrf.mxu0
        %1950 = vmatprep.mubr.bf16.mxu0 0
        %1951 = vmatmul.mubr.bf16.gmra.mxu0 %v1075
        %v1952 = vpop.f32.mrf.mxu0
        %v1953 = vadd.f32 %v484, %v1952
        %v1954 = vpop.f32.mrf.mxu0
        %v1955 = vpop.f32.mrf.mxu0
        %v1956 = vadd.f32 %v484, %v1955
        %v1957 = vpop.f32.mrf.mxu0
        %1958 = vmatprep.mubr.bf16.mxu0 0
        %1959 = vmatmul.mubr.bf16.gmra.mxu0 %v1076
        %v1960 = vpop.f32.mrf.mxu0
        %v1961 = vadd.f32 %v484, %v1960
        %v1962 = vpop.f32.mrf.mxu0
        %v1963 = vpop.f32.mrf.mxu0
        %v1964 = vadd.f32 %v484, %v1963
        %v1965 = vpop.f32.mrf.mxu0
        %1966 = vmatprep.mubr.bf16.mxu0 0
        %1967 = vmatmul.mubr.bf16.gmra.mxu0 %v1077
        %v1968 = vpop.f32.mrf.mxu0
        %v1969 = vadd.f32 %v484, %v1968
        %v1970 = vpop.f32.mrf.mxu0
        %v1971 = vpop.f32.mrf.mxu0
        %v1972 = vadd.f32 %v484, %v1971
        %v1973 = vpop.f32.mrf.mxu0
        %1974 = vmatprep.mubr.bf16.mxu0 0
        %1975 = vmatmul.mubr.bf16.gmra.mxu0 %v1078
        %v1976 = vpop.f32.mrf.mxu0
        %v1977 = vadd.f32 %v484, %v1976
        %v1978 = vpop.f32.mrf.mxu0
        %v1979 = vpop.f32.mrf.mxu0
        %v1980 = vadd.f32 %v484, %v1979
        %v1981 = vpop.f32.mrf.mxu0
        %1982 = vmatprep.mubr.bf16.mxu0 0
        %1983 = vmatmul.mubr.bf16.gmra.mxu0 %v1079
        %v1984 = vpop.f32.mrf.mxu0
        %v1985 = vadd.f32 %v484, %v1984
        %v1986 = vpop.f32.mrf.mxu0
        %v1987 = vpop.f32.mrf.mxu0
        %v1988 = vadd.f32 %v484, %v1987
        %v1989 = vpop.f32.mrf.mxu0
        %1990 = vmatprep.mubr.bf16.mxu0 0
        %1991 = vmatmul.mubr.bf16.gmra.mxu0 %v1080
        %v1992 = vpop.f32.mrf.mxu0
        %v1993 = vadd.f32 %v484, %v1992
        %v1994 = vpop.f32.mrf.mxu0
        %v1995 = vpop.f32.mrf.mxu0
        %v1996 = vadd.f32 %v484, %v1995
        %v1997 = vpop.f32.mrf.mxu0
        %1998 = vmatprep.mubr.bf16.mxu0 0
        %1999 = vmatmul.mubr.bf16.gmra.mxu0 %v1081
        %v2000 = vpop.f32.mrf.mxu0
        %v2001 = vadd.f32 %v484, %v2000
        %v2002 = vpop.f32.mrf.mxu0
        %v2003 = vpop.f32.mrf.mxu0
        %v2004 = vadd.f32 %v484, %v2003
        %v2005 = vpop.f32.mrf.mxu0
        %2006 = vmatprep.mubr.bf16.mxu0 0
        %2007 = vmatmul.mubr.bf16.gmra.mxu0 %v1082
        %v2008 = vpop.f32.mrf.mxu0
        %v2009 = vadd.f32 %v484, %v2008
        %v2010 = vpop.f32.mrf.mxu0
        %v2011 = vpop.f32.mrf.mxu0
        %v2012 = vadd.f32 %v484, %v2011
        %v2013 = vpop.f32.mrf.mxu0
        %2014 = vmatprep.mubr.bf16.mxu0 0
        %2015 = vmatmul.mubr.bf16.gmra.mxu0 %v1083
        %v2016 = vpop.f32.mrf.mxu0
        %v2017 = vadd.f32 %v484, %v2016
        %v2018 = vpop.f32.mrf.mxu0
        %v2019 = vpop.f32.mrf.mxu0
        %v2020 = vadd.f32 %v484, %v2019
        %v2021 = vpop.f32.mrf.mxu0
        %2022 = vmatprep.mubr.bf16.mxu0 0
        %2023 = vmatmul.mubr.bf16.gmra.mxu0 %v1084
        %v2024 = vpop.f32.mrf.mxu0
        %v2025 = vadd.f32 %v484, %v2024
        %v2026 = vpop.f32.mrf.mxu0
        %v2027 = vpop.f32.mrf.mxu0
        %v2028 = vadd.f32 %v484, %v2027
        %v2029 = vpop.f32.mrf.mxu0
        %2030 = vmatprep.mubr.bf16.mxu0 0
        %2031 = vmatmul.mubr.bf16.gmra.mxu0 %v1085
        %v2032 = vpop.f32.mrf.mxu0
        %v2033 = vadd.f32 %v484, %v2032
        %v2034 = vpop.f32.mrf.mxu0
        %v2035 = vpop.f32.mrf.mxu0
        %v2036 = vadd.f32 %v484, %v2035
        %v2037 = vpop.f32.mrf.mxu0
        %2038 = vmatprep.mubr.bf16.mxu0 0
        %2039 = vmatmul.mubr.bf16.gmra.mxu0 %v1086
        %v2040 = vpop.f32.mrf.mxu0
        %v2041 = vadd.f32 %v484, %v2040
        %v2042 = vpop.f32.mrf.mxu0
        %v2043 = vpop.f32.mrf.mxu0
        %v2044 = vadd.f32 %v484, %v2043
        %v2045 = vpop.f32.mrf.mxu0
        %2046 = vmatprep.mubr.bf16.mxu0 0
        %2047 = vmatmul.mubr.bf16.gmra.mxu0 %v1087
        %v2048 = vpop.f32.mrf.mxu0
        %v2049 = vadd.f32 %v484, %v2048
        %v2050 = vpop.f32.mrf.mxu0
        %v2051 = vpop.f32.mrf.mxu0
        %v2052 = vadd.f32 %v484, %v2051
        %v2053 = vpop.f32.mrf.mxu0
        %2054 = vmatprep.mubr.bf16.mxu0 0
        %2055 = vmatmul.mubr.bf16.gmra.mxu0 %v1088
        %v2056 = vpop.f32.mrf.mxu0
        %v2057 = vadd.f32 %v484, %v2056
        %v2058 = vpop.f32.mrf.mxu0
        %v2059 = vpop.f32.mrf.mxu0
        %v2060 = vadd.f32 %v484, %v2059
        %v2061 = vpop.f32.mrf.mxu0
        %2062 = vmatprep.mubr.bf16.mxu0 0
        %2063 = vmatmul.mubr.bf16.gmra.mxu0 %v1089
        %v2064 = vpop.f32.mrf.mxu0
        %v2065 = vadd.f32 %v484, %v2064
        %v2066 = vpop.f32.mrf.mxu0
        %v2067 = vpop.f32.mrf.mxu0
        %v2068 = vadd.f32 %v484, %v2067
        %v2069 = vpop.f32.mrf.mxu0
        %2070 = vmatprep.mubr.bf16.mxu0 0
        %2071 = vmatmul.mubr.bf16.gmra.mxu0 %v1090
        %v2072 = vpop.f32.mrf.mxu0
        %v2073 = vadd.f32 %v484, %v2072
        %v2074 = vpop.f32.mrf.mxu0
        %v2075 = vpop.f32.mrf.mxu0
        %v2076 = vadd.f32 %v484, %v2075
        %v2077 = vpop.f32.mrf.mxu0
        %2078 = vmatprep.mubr.bf16.mxu0 0
        %2079 = vmatmul.mubr.bf16.gmra.mxu0 %v1091
        %v2080 = vpop.f32.mrf.mxu0
        %v2081 = vadd.f32 %v484, %v2080
        %v2082 = vpop.f32.mrf.mxu0
        %v2083 = vpop.f32.mrf.mxu0
        %v2084 = vadd.f32 %v484, %v2083
        %v2085 = vpop.f32.mrf.mxu0
        %2086 = vmatprep.mubr.bf16.mxu0 0
        %2087 = vmatmul.mubr.bf16.gmra.mxu0 %v1092
        %v2088 = vpop.f32.mrf.mxu0
        %v2089 = vadd.f32 %v484, %v2088
        %v2090 = vpop.f32.mrf.mxu0
        %v2091 = vpop.f32.mrf.mxu0
        %v2092 = vadd.f32 %v484, %v2091
        %v2093 = vpop.f32.mrf.mxu0
        %2094 = vmatprep.mubr.bf16.mxu0 0
        %2095 = vmatmul.mubr.bf16.gmra.mxu0 %v1093
        %v2096 = vpop.f32.mrf.mxu0
        %v2097 = vadd.f32 %v484, %v2096
        %v2098 = vpop.f32.mrf.mxu0
        %v2099 = vpop.f32.mrf.mxu0
        %v2100 = vadd.f32 %v484, %v2099
        %v2101 = vpop.f32.mrf.mxu0
        %2102 = vmatprep.mubr.bf16.mxu0 0
        %2103 = vmatmul.mubr.bf16.gmra.mxu0 %v1094
        %v2104 = vpop.f32.mrf.mxu0
        %v2105 = vadd.f32 %v484, %v2104
        %v2106 = vpop.f32.mrf.mxu0
        %v2107 = vpop.f32.mrf.mxu0
        %v2108 = vadd.f32 %v484, %v2107
        %v2109 = vpop.f32.mrf.mxu0
        %2110 = vmatprep.mubr.bf16.mxu0 0
        %2111 = vmatmul.mubr.bf16.gmra.mxu0 %v1095
        %v2112 = vpop.f32.mrf.mxu0
        %v2113 = vadd.f32 %v484, %v2112
        %v2114 = vpop.f32.mrf.mxu0
        %v2115 = vpop.f32.mrf.mxu0
        %v2116 = vadd.f32 %v484, %v2115
        %v2117 = vpop.f32.mrf.mxu0
        %2118 = vmatprep.mubr.bf16.mxu0 0
        %2119 = vmatmul.mubr.bf16.gmra.mxu0 %v1096
        %v2120 = vpop.f32.mrf.mxu0
        %v2121 = vadd.f32 %v484, %v2120
        %v2122 = vpop.f32.mrf.mxu0
        %v2123 = vpop.f32.mrf.mxu0
        %v2124 = vadd.f32 %v484, %v2123
        %v2125 = vpop.f32.mrf.mxu0
        %2126 = vmatprep.mubr.bf16.mxu0 0
        %2127 = vmatmul.mubr.bf16.gmra.mxu0 %v1097
        %v2128 = vpop.f32.mrf.mxu0
        %v2129 = vadd.f32 %v484, %v2128
        %v2130 = vpop.f32.mrf.mxu0
        %v2131 = vpop.f32.mrf.mxu0
        %v2132 = vadd.f32 %v484, %v2131
        %v2133 = vpop.f32.mrf.mxu0
        %2134 = vmatprep.mubr.bf16.mxu0 0
        %2135 = vmatmul.mubr.bf16.gmra.mxu0 %v1098
        %v2136 = vpop.f32.mrf.mxu0
        %v2137 = vadd.f32 %v484, %v2136
        %v2138 = vpop.f32.mrf.mxu0
        %v2139 = vpop.f32.mrf.mxu0
        %v2140 = vadd.f32 %v484, %v2139
        %v2141 = vpop.f32.mrf.mxu0
        %2142 = vmatprep.mubr.bf16.mxu0 0
        %2143 = vmatmul.mubr.bf16.gmra.mxu0 %v1099
        %v2144 = vpop.f32.mrf.mxu0
        %v2145 = vadd.f32 %v484, %v2144
        %v2146 = vpop.f32.mrf.mxu0
        %v2147 = vpop.f32.mrf.mxu0
        %v2148 = vadd.f32 %v484, %v2147
        %v2149 = vpop.f32.mrf.mxu0
        %2150 = vmatprep.mubr.bf16.mxu0 0
        %2151 = vmatmul.mubr.bf16.gmra.mxu0 %v1100
        %v2152 = vpop.f32.mrf.mxu0
        %v2153 = vadd.f32 %v484, %v2152
        %v2154 = vpop.f32.mrf.mxu0
        %v2155 = vpop.f32.mrf.mxu0
        %v2156 = vadd.f32 %v484, %v2155
        %v2157 = vpop.f32.mrf.mxu0
        %2158 = vmatprep.mubr.bf16.mxu0 0
        %2159 = vmatmul.mubr.bf16.gmra.mxu0 %v1101
        %v2160 = vpop.f32.mrf.mxu0
        %v2161 = vadd.f32 %v484, %v2160
        %v2162 = vpop.f32.mrf.mxu0
        %v2163 = vpop.f32.mrf.mxu0
        %v2164 = vadd.f32 %v484, %v2163
        %v2165 = vpop.f32.mrf.mxu0
        %2166 = vmatprep.mubr.bf16.mxu0 0
        %2167 = vmatmul.mubr.bf16.gmra.mxu0 %v1102
        %v2168 = vpop.f32.mrf.mxu0
        %v2169 = vadd.f32 %v484, %v2168
        %v2170 = vpop.f32.mrf.mxu0
        %v2171 = vpop.f32.mrf.mxu0
        %v2172 = vadd.f32 %v484, %v2171
        %v2173 = vpop.f32.mrf.mxu0
        %2174 = vmatprep.mubr.bf16.mxu0 0
        %2175 = vmatmul.mubr.bf16.gmra.mxu0 %v1103
        %v2176 = vpop.f32.mrf.mxu0
        %v2177 = vadd.f32 %v484, %v2176
        %v2178 = vpop.f32.mrf.mxu0
        %v2179 = vpop.f32.mrf.mxu0
        %v2180 = vadd.f32 %v484, %v2179
        %v2181 = vpop.f32.mrf.mxu0
        %2182 = vmatprep.mubr.bf16.mxu0 0
        %2183 = vmatmul.mubr.bf16.gmra.mxu0 %v1104
        %v2184 = vpop.f32.mrf.mxu0
        %v2185 = vadd.f32 %v484, %v2184
        %v2186 = vpop.f32.mrf.mxu0
        %v2187 = vpop.f32.mrf.mxu0
        %v2188 = vadd.f32 %v484, %v2187
        %v2189 = vpop.f32.mrf.mxu0
        %2190 = vmatprep.mubr.bf16.mxu0 0
        %2191 = vmatmul.mubr.bf16.gmra.mxu0 %v1105
        %v2192 = vpop.f32.mrf.mxu0
        %v2193 = vadd.f32 %v484, %v2192
        %v2194 = vpop.f32.mrf.mxu0
        %v2195 = vpop.f32.mrf.mxu0
        %v2196 = vadd.f32 %v484, %v2195
        %v2197 = vpop.f32.mrf.mxu0
        %2198 = vmatprep.mubr.bf16.mxu0 0
        %2199 = vmatmul.mubr.bf16.gmra.mxu0 %v1106
        %v2200 = vpop.f32.mrf.mxu0
        %v2201 = vadd.f32 %v484, %v2200
        %v2202 = vpop.f32.mrf.mxu0
        %v2203 = vpop.f32.mrf.mxu0
        %v2204 = vadd.f32 %v484, %v2203
        %v2205 = vpop.f32.mrf.mxu0
        %2206 = vmatprep.mubr.bf16.mxu0 0
        %2207 = vmatmul.mubr.bf16.gmra.mxu0 %v1107
        %v2208 = vpop.f32.mrf.mxu0
        %v2209 = vadd.f32 %v484, %v2208
        %v2210 = vpop.f32.mrf.mxu0
        %v2211 = vpop.f32.mrf.mxu0
        %v2212 = vadd.f32 %v484, %v2211
        %v2213 = vpop.f32.mrf.mxu0
        %2214 = vmatprep.mubr.bf16.mxu0 0
        %2215 = vmatmul.mubr.bf16.gmra.mxu0 %v1108
        %v2216 = vpop.f32.mrf.mxu0
        %v2217 = vadd.f32 %v484, %v2216
        %v2218 = vpop.f32.mrf.mxu0
        %v2219 = vpop.f32.mrf.mxu0
        %v2220 = vadd.f32 %v484, %v2219
        %v2221 = vpop.f32.mrf.mxu0
        %2222 = vmatprep.mubr.bf16.mxu0 0
        %2223 = vmatmul.mubr.bf16.gmra.mxu0 %v1109
        %v2224 = vpop.f32.mrf.mxu0
        %v2225 = vadd.f32 %v484, %v2224
        %v2226 = vpop.f32.mrf.mxu0
        %v2227 = vpop.f32.mrf.mxu0
        %v2228 = vadd.f32 %v484, %v2227
        %v2229 = vpop.f32.mrf.mxu0
        %2230 = vmatprep.mubr.bf16.mxu0 0
        %2231 = vmatmul.mubr.bf16.gmra.mxu0 %v1110
        %v2232 = vpop.f32.mrf.mxu0
        %v2233 = vadd.f32 %v484, %v2232
        %v2234 = vpop.f32.mrf.mxu0
        %v2235 = vpop.f32.mrf.mxu0
        %v2236 = vadd.f32 %v484, %v2235
        %v2237 = vpop.f32.mrf.mxu0
        %2238 = vmatprep.mubr.bf16.mxu0 0
        %2239 = vmatmul.mubr.bf16.gmra.mxu0 %v1111
        %v2240 = vpop.f32.mrf.mxu0
        %v2241 = vadd.f32 %v484, %v2240
        %v2242 = vpop.f32.mrf.mxu0
        %v2243 = vpop.f32.mrf.mxu0
        %v2244 = vadd.f32 %v484, %v2243
        %v2245 = vpop.f32.mrf.mxu0
        %2246 = vmatprep.mubr.bf16.mxu0 0
        %2247 = vmatmul.mubr.bf16.gmra.mxu0 %v1112
        %v2248 = vpop.f32.mrf.mxu0
        %v2249 = vadd.f32 %v484, %v2248
        %v2250 = vpop.f32.mrf.mxu0
        %v2251 = vpop.f32.mrf.mxu0
        %v2252 = vadd.f32 %v484, %v2251
        %v2253 = vpop.f32.mrf.mxu0
        %2254 = vmatprep.mubr.bf16.mxu0 0
        %2255 = vmatmul.mubr.bf16.gmra.mxu0 %v1113
        %v2256 = vpop.f32.mrf.mxu0
        %v2257 = vadd.f32 %v484, %v2256
        %v2258 = vpop.f32.mrf.mxu0
        %v2259 = vpop.f32.mrf.mxu0
        %v2260 = vadd.f32 %v484, %v2259
        %v2261 = vpop.f32.mrf.mxu0
        %2262 = vmatprep.mubr.bf16.mxu0 0
        %2263 = vmatmul.mubr.bf16.gmra.mxu0 %v1114
        %v2264 = vpop.f32.mrf.mxu0
        %v2265 = vadd.f32 %v484, %v2264
        %v2266 = vpop.f32.mrf.mxu0
        %v2267 = vpop.f32.mrf.mxu0
        %v2268 = vadd.f32 %v484, %v2267
        %v2269 = vpop.f32.mrf.mxu0
        %2270 = vmatprep.mubr.bf16.mxu0 0
        %2271 = vmatmul.mubr.bf16.gmra.mxu0 %v1115
        %v2272 = vpop.f32.mrf.mxu0
        %v2273 = vadd.f32 %v484, %v2272
        %v2274 = vpop.f32.mrf.mxu0
        %v2275 = vpop.f32.mrf.mxu0
        %v2276 = vadd.f32 %v484, %v2275
        %v2277 = vpop.f32.mrf.mxu0
        %2278 = vmatprep.mubr.bf16.mxu0 0
        %2279 = vmatmul.mubr.bf16.gmra.mxu0 %v1116
        %v2280 = vpop.f32.mrf.mxu0
        %v2281 = vadd.f32 %v484, %v2280
        %v2282 = vpop.f32.mrf.mxu0
        %v2283 = vpop.f32.mrf.mxu0
        %v2284 = vadd.f32 %v484, %v2283
        %v2285 = vpop.f32.mrf.mxu0
        %2286 = vmatprep.mubr.bf16.mxu0 0
        %2287 = vmatmul.mubr.bf16.gmra.mxu0 %v1117
        %v2288 = vpop.f32.mrf.mxu0
        %v2289 = vadd.f32 %v484, %v2288
        %v2290 = vpop.f32.mrf.mxu0
        %v2291 = vpop.f32.mrf.mxu0
        %v2292 = vadd.f32 %v484, %v2291
        %v2293 = vpop.f32.mrf.mxu0
        %2294 = vmatprep.mubr.bf16.mxu0 0
        %2295 = vmatmul.mubr.bf16.gmra.mxu0 %v1118
        %v2296 = vpop.f32.mrf.mxu0
        %v2297 = vadd.f32 %v484, %v2296
        %v2298 = vpop.f32.mrf.mxu0
        %v2299 = vpop.f32.mrf.mxu0
        %v2300 = vadd.f32 %v484, %v2299
        %v2301 = vpop.f32.mrf.mxu0
        %2302 = vmatprep.mubr.bf16.mxu0 0
        %2303 = vmatmul.mubr.bf16.gmra.mxu0 %v1119
        %v2304 = vpop.f32.mrf.mxu0
        %v2305 = vadd.f32 %v484, %v2304
        %v2306 = vpop.f32.mrf.mxu0
        %v2307 = vpop.f32.mrf.mxu0
        %v2308 = vadd.f32 %v484, %v2307
        %v2309 = vpop.f32.mrf.mxu0
        %2310 = vmatprep.mubr.bf16.mxu0 0
        %2311 = vmatmul.mubr.bf16.gmra.mxu0 %v1120
        %v2312 = vpop.f32.mrf.mxu0
        %v2313 = vadd.f32 %v484, %v2312
        %v2314 = vpop.f32.mrf.mxu0
        %v2315 = vpop.f32.mrf.mxu0
        %v2316 = vadd.f32 %v484, %v2315
        %v2317 = vpop.f32.mrf.mxu0
        %2318 = vmatprep.mubr.bf16.mxu0 0
        %2319 = vmatmul.mubr.bf16.gmra.mxu0 %v1121
        %v2320 = vpop.f32.mrf.mxu0
        %v2321 = vadd.f32 %v484, %v2320
        %v2322 = vpop.f32.mrf.mxu0
        %v2323 = vpop.f32.mrf.mxu0
        %v2324 = vadd.f32 %v484, %v2323
        %v2325 = vpop.f32.mrf.mxu0
        %2326 = vmatprep.mubr.bf16.mxu0 0
        %2327 = vmatmul.mubr.bf16.gmra.mxu0 %v1122
        %v2328 = vpop.f32.mrf.mxu0
        %v2329 = vadd.f32 %v484, %v2328
        %v2330 = vpop.f32.mrf.mxu0
        %v2331 = vpop.f32.mrf.mxu0
        %v2332 = vadd.f32 %v484, %v2331
        %v2333 = vpop.f32.mrf.mxu0
        %2334 = vmatprep.mubr.bf16.mxu0 0
        %2335 = vmatmul.mubr.bf16.gmra.mxu0 %v1123
        %v2336 = vpop.f32.mrf.mxu0
        %v2337 = vadd.f32 %v484, %v2336
        %v2338 = vpop.f32.mrf.mxu0
        %v2339 = vpop.f32.mrf.mxu0
        %v2340 = vadd.f32 %v484, %v2339
        %v2341 = vpop.f32.mrf.mxu0
        %2342 = vmatprep.mubr.bf16.mxu0 0
        %2343 = vmatmul.mubr.bf16.gmra.mxu0 %v1124
        %v2344 = vpop.f32.mrf.mxu0
        %v2345 = vadd.f32 %v484, %v2344
        %v2346 = vpop.f32.mrf.mxu0
        %v2347 = vpop.f32.mrf.mxu0
        %v2348 = vadd.f32 %v484, %v2347
        %v2349 = vpop.f32.mrf.mxu0
        %2350 = vmatprep.mubr.bf16.mxu0 0
        %2351 = vmatmul.mubr.bf16.gmra.mxu0 %v1125
        %v2352 = vpop.f32.mrf.mxu0
        %v2353 = vadd.f32 %v484, %v2352
        %v2354 = vpop.f32.mrf.mxu0
        %v2355 = vpop.f32.mrf.mxu0
        %v2356 = vadd.f32 %v484, %v2355
        %v2357 = vpop.f32.mrf.mxu0
        %2358 = vdwg.mxu0
        %v2359 = vmax.f32 %v1337, 0.0
        %v2360 = vmax.f32 %v1340, 0.0
        %v2361 = vmax.f32 %v1345, 0.0
        %v2362 = vmax.f32 %v1348, 0.0
        %v2363 = vmax.f32 %v1353, 0.0
        %v2364 = vmax.f32 %v1356, 0.0
        %v2365 = vmax.f32 %v1361, 0.0
        %v2366 = vmax.f32 %v1364, 0.0
        %v2367 = vmax.f32 %v1369, 0.0
        %v2368 = vmax.f32 %v1372, 0.0
        %v2369 = vmax.f32 %v1377, 0.0
        %v2370 = vmax.f32 %v1380, 0.0
        %v2371 = vmax.f32 %v1385, 0.0
        %v2372 = vmax.f32 %v1388, 0.0
        %v2373 = vmax.f32 %v1393, 0.0
        %v2374 = vmax.f32 %v1396, 0.0
        %v2375 = vmax.f32 %v1401, 0.0
        %v2376 = vmax.f32 %v1404, 0.0
        %v2377 = vmax.f32 %v1409, 0.0
        %v2378 = vmax.f32 %v1412, 0.0
        %v2379 = vmax.f32 %v1417, 0.0
        %v2380 = vmax.f32 %v1420, 0.0
        %v2381 = vmax.f32 %v1425, 0.0
        %v2382 = vmax.f32 %v1428, 0.0
        %v2383 = vmax.f32 %v1433, 0.0
        %v2384 = vmax.f32 %v1436, 0.0
        %v2385 = vmax.f32 %v1441, 0.0
        %v2386 = vmax.f32 %v1444, 0.0
        %v2387 = vmax.f32 %v1449, 0.0
        %v2388 = vmax.f32 %v1452, 0.0
        %v2389 = vmax.f32 %v1457, 0.0
        %v2390 = vmax.f32 %v1460, 0.0
        %v2391 = vmax.f32 %v1465, 0.0
        %v2392 = vmax.f32 %v1468, 0.0
        %v2393 = vmax.f32 %v1473, 0.0
        %v2394 = vmax.f32 %v1476, 0.0
        %v2395 = vmax.f32 %v1481, 0.0
        %v2396 = vmax.f32 %v1484, 0.0
        %v2397 = vmax.f32 %v1489, 0.0
        %v2398 = vmax.f32 %v1492, 0.0
        %v2399 = vmax.f32 %v1497, 0.0
        %v2400 = vmax.f32 %v1500, 0.0
        %v2401 = vmax.f32 %v1505, 0.0
        %v2402 = vmax.f32 %v1508, 0.0
        %v2403 = vmax.f32 %v1513, 0.0
        %v2404 = vmax.f32 %v1516, 0.0
        %v2405 = vmax.f32 %v1521, 0.0
        %v2406 = vmax.f32 %v1524, 0.0
        %v2407 = vmax.f32 %v1529, 0.0
        %v2408 = vmax.f32 %v1532, 0.0
        %v2409 = vmax.f32 %v1537, 0.0
        %v2410 = vmax.f32 %v1540, 0.0
        %v2411 = vmax.f32 %v1545, 0.0
        %v2412 = vmax.f32 %v1548, 0.0
        %v2413 = vmax.f32 %v1553, 0.0
        %v2414 = vmax.f32 %v1556, 0.0
        %v2415 = vmax.f32 %v1561, 0.0
        %v2416 = vmax.f32 %v1564, 0.0
        %v2417 = vmax.f32 %v1569, 0.0
        %v2418 = vmax.f32 %v1572, 0.0
        %v2419 = vmax.f32 %v1577, 0.0
        %v2420 = vmax.f32 %v1580, 0.0
        %v2421 = vmax.f32 %v1585, 0.0
        %v2422 = vmax.f32 %v1588, 0.0
        %v2423 = vmax.f32 %v1593, 0.0
        %v2424 = vmax.f32 %v1596, 0.0
        %v2425 = vmax.f32 %v1601, 0.0
        %v2426 = vmax.f32 %v1604, 0.0
        %v2427 = vmax.f32 %v1609, 0.0
        %v2428 = vmax.f32 %v1612, 0.0
        %v2429 = vmax.f32 %v1617, 0.0
        %v2430 = vmax.f32 %v1620, 0.0
        %v2431 = vmax.f32 %v1625, 0.0
        %v2432 = vmax.f32 %v1628, 0.0
        %v2433 = vmax.f32 %v1633, 0.0
        %v2434 = vmax.f32 %v1636, 0.0
        %v2435 = vmax.f32 %v1641, 0.0
        %v2436 = vmax.f32 %v1644, 0.0
        %v2437 = vmax.f32 %v1649, 0.0
        %v2438 = vmax.f32 %v1652, 0.0
        %v2439 = vmax.f32 %v1657, 0.0
        %v2440 = vmax.f32 %v1660, 0.0
        %v2441 = vmax.f32 %v1665, 0.0
        %v2442 = vmax.f32 %v1668, 0.0
        %v2443 = vmax.f32 %v1673, 0.0
        %v2444 = vmax.f32 %v1676, 0.0
        %v2445 = vmax.f32 %v1681, 0.0
        %v2446 = vmax.f32 %v1684, 0.0
        %v2447 = vmax.f32 %v1689, 0.0
        %v2448 = vmax.f32 %v1692, 0.0
        %v2449 = vmax.f32 %v1697, 0.0
        %v2450 = vmax.f32 %v1700, 0.0
        %v2451 = vmax.f32 %v1705, 0.0
        %v2452 = vmax.f32 %v1708, 0.0
        %v2453 = vmax.f32 %v1713, 0.0
        %v2454 = vmax.f32 %v1716, 0.0
        %v2455 = vmax.f32 %v1721, 0.0
        %v2456 = vmax.f32 %v1724, 0.0
        %v2457 = vmax.f32 %v1729, 0.0
        %v2458 = vmax.f32 %v1732, 0.0
        %v2459 = vmax.f32 %v1737, 0.0
        %v2460 = vmax.f32 %v1740, 0.0
        %v2461 = vmax.f32 %v1745, 0.0
        %v2462 = vmax.f32 %v1748, 0.0
        %v2463 = vmax.f32 %v1753, 0.0
        %v2464 = vmax.f32 %v1756, 0.0
        %v2465 = vmax.f32 %v1761, 0.0
        %v2466 = vmax.f32 %v1764, 0.0
        %v2467 = vmax.f32 %v1769, 0.0
        %v2468 = vmax.f32 %v1772, 0.0
        %v2469 = vmax.f32 %v1777, 0.0
        %v2470 = vmax.f32 %v1780, 0.0
        %v2471 = vmax.f32 %v1785, 0.0
        %v2472 = vmax.f32 %v1788, 0.0
        %v2473 = vmax.f32 %v1793, 0.0
        %v2474 = vmax.f32 %v1796, 0.0
        %v2475 = vmax.f32 %v1801, 0.0
        %v2476 = vmax.f32 %v1804, 0.0
        %v2477 = vmax.f32 %v1809, 0.0
        %v2478 = vmax.f32 %v1812, 0.0
        %v2479 = vmax.f32 %v1817, 0.0
        %v2480 = vmax.f32 %v1820, 0.0
        %v2481 = vmax.f32 %v1825, 0.0
        %v2482 = vmax.f32 %v1828, 0.0
        %v2483 = vmax.f32 %v1833, 0.0
        %v2484 = vmax.f32 %v1836, 0.0
        %v2485 = vmax.f32 %v1841, 0.0
        %v2486 = vmax.f32 %v1844, 0.0
        %v2487 = vmax.f32 %v1849, 0.0
        %v2488 = vmax.f32 %v1852, 0.0
        %v2489 = vmax.f32 %v1857, 0.0
        %v2490 = vmax.f32 %v1860, 0.0
        %v2491 = vmax.f32 %v1865, 0.0
        %v2492 = vmax.f32 %v1868, 0.0
        %v2493 = vmax.f32 %v1873, 0.0
        %v2494 = vmax.f32 %v1876, 0.0
        %v2495 = vmax.f32 %v1881, 0.0
        %v2496 = vmax.f32 %v1884, 0.0
        %v2497 = vmax.f32 %v1889, 0.0
        %v2498 = vmax.f32 %v1892, 0.0
        %v2499 = vmax.f32 %v1897, 0.0
        %v2500 = vmax.f32 %v1900, 0.0
        %v2501 = vmax.f32 %v1905, 0.0
        %v2502 = vmax.f32 %v1908, 0.0
        %v2503 = vmax.f32 %v1913, 0.0
        %v2504 = vmax.f32 %v1916, 0.0
        %v2505 = vmax.f32 %v1921, 0.0
        %v2506 = vmax.f32 %v1924, 0.0
        %v2507 = vmax.f32 %v1929, 0.0
        %v2508 = vmax.f32 %v1932, 0.0
        %v2509 = vmax.f32 %v1937, 0.0
        %v2510 = vmax.f32 %v1940, 0.0
        %v2511 = vmax.f32 %v1945, 0.0
        %v2512 = vmax.f32 %v1948, 0.0
        %v2513 = vmax.f32 %v1953, 0.0
        %v2514 = vmax.f32 %v1956, 0.0
        %v2515 = vmax.f32 %v1961, 0.0
        %v2516 = vmax.f32 %v1964, 0.0
        %v2517 = vmax.f32 %v1969, 0.0
        %v2518 = vmax.f32 %v1972, 0.0
        %v2519 = vmax.f32 %v1977, 0.0
        %v2520 = vmax.f32 %v1980, 0.0
        %v2521 = vmax.f32 %v1985, 0.0
        %v2522 = vmax.f32 %v1988, 0.0
        %v2523 = vmax.f32 %v1993, 0.0
        %v2524 = vmax.f32 %v1996, 0.0
        %v2525 = vmax.f32 %v2001, 0.0
        %v2526 = vmax.f32 %v2004, 0.0
        %v2527 = vmax.f32 %v2009, 0.0
        %v2528 = vmax.f32 %v2012, 0.0
        %v2529 = vmax.f32 %v2017, 0.0
        %v2530 = vmax.f32 %v2020, 0.0
        %v2531 = vmax.f32 %v2025, 0.0
        %v2532 = vmax.f32 %v2028, 0.0
        %v2533 = vmax.f32 %v2033, 0.0
        %v2534 = vmax.f32 %v2036, 0.0
        %v2535 = vmax.f32 %v2041, 0.0
        %v2536 = vmax.f32 %v2044, 0.0
        %v2537 = vmax.f32 %v2049, 0.0
        %v2538 = vmax.f32 %v2052, 0.0
        %v2539 = vmax.f32 %v2057, 0.0
        %v2540 = vmax.f32 %v2060, 0.0
        %v2541 = vmax.f32 %v2065, 0.0
        %v2542 = vmax.f32 %v2068, 0.0
        %v2543 = vmax.f32 %v2073, 0.0
        %v2544 = vmax.f32 %v2076, 0.0
        %v2545 = vmax.f32 %v2081, 0.0
        %v2546 = vmax.f32 %v2084, 0.0
        %v2547 = vmax.f32 %v2089, 0.0
        %v2548 = vmax.f32 %v2092, 0.0
        %v2549 = vmax.f32 %v2097, 0.0
        %v2550 = vmax.f32 %v2100, 0.0
        %v2551 = vmax.f32 %v2105, 0.0
        %v2552 = vmax.f32 %v2108, 0.0
        %v2553 = vmax.f32 %v2113, 0.0
        %v2554 = vmax.f32 %v2116, 0.0
        %v2555 = vmax.f32 %v2121, 0.0
        %v2556 = vmax.f32 %v2124, 0.0
        %v2557 = vmax.f32 %v2129, 0.0
        %v2558 = vmax.f32 %v2132, 0.0
        %v2559 = vmax.f32 %v2137, 0.0
        %v2560 = vmax.f32 %v2140, 0.0
        %v2561 = vmax.f32 %v2145, 0.0
        %v2562 = vmax.f32 %v2148, 0.0
        %v2563 = vmax.f32 %v2153, 0.0
        %v2564 = vmax.f32 %v2156, 0.0
        %v2565 = vmax.f32 %v2161, 0.0
        %v2566 = vmax.f32 %v2164, 0.0
        %v2567 = vmax.f32 %v2169, 0.0
        %v2568 = vmax.f32 %v2172, 0.0
        %v2569 = vmax.f32 %v2177, 0.0
        %v2570 = vmax.f32 %v2180, 0.0
        %v2571 = vmax.f32 %v2185, 0.0
        %v2572 = vmax.f32 %v2188, 0.0
        %v2573 = vmax.f32 %v2193, 0.0
        %v2574 = vmax.f32 %v2196, 0.0
        %v2575 = vmax.f32 %v2201, 0.0
        %v2576 = vmax.f32 %v2204, 0.0
        %v2577 = vmax.f32 %v2209, 0.0
        %v2578 = vmax.f32 %v2212, 0.0
        %v2579 = vmax.f32 %v2217, 0.0
        %v2580 = vmax.f32 %v2220, 0.0
        %v2581 = vmax.f32 %v2225, 0.0
        %v2582 = vmax.f32 %v2228, 0.0
        %v2583 = vmax.f32 %v2233, 0.0
        %v2584 = vmax.f32 %v2236, 0.0
        %v2585 = vmax.f32 %v2241, 0.0
        %v2586 = vmax.f32 %v2244, 0.0
        %v2587 = vmax.f32 %v2249, 0.0
        %v2588 = vmax.f32 %v2252, 0.0
        %v2589 = vmax.f32 %v2257, 0.0
        %v2590 = vmax.f32 %v2260, 0.0
        %v2591 = vmax.f32 %v2265, 0.0
        %v2592 = vmax.f32 %v2268, 0.0
        %v2593 = vmax.f32 %v2273, 0.0
        %v2594 = vmax.f32 %v2276, 0.0
        %v2595 = vmax.f32 %v2281, 0.0
        %v2596 = vmax.f32 %v2284, 0.0
        %v2597 = vmax.f32 %v2289, 0.0
        %v2598 = vmax.f32 %v2292, 0.0
        %v2599 = vmax.f32 %v2297, 0.0
        %v2600 = vmax.f32 %v2300, 0.0
        %v2601 = vmax.f32 %v2305, 0.0
        %v2602 = vmax.f32 %v2308, 0.0
        %v2603 = vmax.f32 %v2313, 0.0
        %v2604 = vmax.f32 %v2316, 0.0
        %v2605 = vmax.f32 %v2321, 0.0
        %v2606 = vmax.f32 %v2324, 0.0
        %v2607 = vmax.f32 %v2329, 0.0
        %v2608 = vmax.f32 %v2332, 0.0
        %v2609 = vmax.f32 %v2337, 0.0
        %v2610 = vmax.f32 %v2340, 0.0
        %v2611 = vmax.f32 %v2345, 0.0
        %v2612 = vmax.f32 %v2348, 0.0
        %v2613 = vmax.f32 %v2353, 0.0
        %v2614 = vmax.f32 %v2356, 0.0
        %v2615 = vadd.f32 %v2359, %v2360
        %v2616 = vadd.f32 %v2615, %v2361
        %v2617 = vadd.f32 %v2616, %v2362
        %v2618 = vadd.f32 %v2617, %v2363
        %v2619 = vadd.f32 %v2618, %v2364
        %v2620 = vadd.f32 %v2619, %v2365
        %v2621 = vadd.f32 %v2620, %v2366
        %v2622 = vadd.f32 %v2621, %v2367
        %v2623 = vadd.f32 %v2622, %v2368
        %v2624 = vadd.f32 %v2623, %v2369
        %v2625 = vadd.f32 %v2624, %v2370
        %v2626 = vadd.f32 %v2625, %v2371
        %v2627 = vadd.f32 %v2626, %v2372
        %v2628 = vadd.f32 %v2627, %v2373
        %v2629 = vadd.f32 %v2628, %v2374
        %v2630 = vadd.f32 %v2629, %v2375
        %v2631 = vadd.f32 %v2630, %v2376
        %v2632 = vadd.f32 %v2631, %v2377
        %v2633 = vadd.f32 %v2632, %v2378
        %v2634 = vadd.f32 %v2633, %v2379
        %v2635 = vadd.f32 %v2634, %v2380
        %v2636 = vadd.f32 %v2635, %v2381
        %v2637 = vadd.f32 %v2636, %v2382
        %v2638 = vadd.f32 %v2637, %v2383
        %v2639 = vadd.f32 %v2638, %v2384
        %v2640 = vadd.f32 %v2639, %v2385
        %v2641 = vadd.f32 %v2640, %v2386
        %v2642 = vadd.f32 %v2641, %v2387
        %v2643 = vadd.f32 %v2642, %v2388
        %v2644 = vadd.f32 %v2643, %v2389
        %v2645 = vadd.f32 %v2644, %v2390
        %v2646 = vrot.slane %v2645, 4
        %v2647 = vadd.f32 %v2645, %v2646
        %v2648 = vrot.slane %v2647, 2
        %v2649 = vadd.f32 %v2647, %v2648
        %v2650 = vrot.slane %v2649, 1
        %v2651 = vadd.f32 %v2649, %v2650
        %v2652 = vadd.f32 %v2391, %v2392
        %v2653 = vadd.f32 %v2652, %v2393
        %v2654 = vadd.f32 %v2653, %v2394
        %v2655 = vadd.f32 %v2654, %v2395
        %v2656 = vadd.f32 %v2655, %v2396
        %v2657 = vadd.f32 %v2656, %v2397
        %v2658 = vadd.f32 %v2657, %v2398
        %v2659 = vadd.f32 %v2658, %v2399
        %v2660 = vadd.f32 %v2659, %v2400
        %v2661 = vadd.f32 %v2660, %v2401
        %v2662 = vadd.f32 %v2661, %v2402
        %v2663 = vadd.f32 %v2662, %v2403
        %v2664 = vadd.f32 %v2663, %v2404
        %v2665 = vadd.f32 %v2664, %v2405
        %v2666 = vadd.f32 %v2665, %v2406
        %v2667 = vadd.f32 %v2666, %v2407
        %v2668 = vadd.f32 %v2667, %v2408
        %v2669 = vadd.f32 %v2668, %v2409
        %v2670 = vadd.f32 %v2669, %v2410
        %v2671 = vadd.f32 %v2670, %v2411
        %v2672 = vadd.f32 %v2671, %v2412
        %v2673 = vadd.f32 %v2672, %v2413
        %v2674 = vadd.f32 %v2673, %v2414
        %v2675 = vadd.f32 %v2674, %v2415
        %v2676 = vadd.f32 %v2675, %v2416
        %v2677 = vadd.f32 %v2676, %v2417
        %v2678 = vadd.f32 %v2677, %v2418
        %v2679 = vadd.f32 %v2678, %v2419
        %v2680 = vadd.f32 %v2679, %v2420
        %v2681 = vadd.f32 %v2680, %v2421
        %v2682 = vadd.f32 %v2681, %v2422
        %v2683 = vrot.slane %v2682, 4
        %v2684 = vadd.f32 %v2682, %v2683
        %v2685 = vrot.slane %v2684, 2
        %v2686 = vadd.f32 %v2684, %v2685
        %v2687 = vrot.slane %v2686, 1
        %v2688 = vadd.f32 %v2686, %v2687
        %v2689 = vadd.f32 %v2423, %v2424
        %v2690 = vadd.f32 %v2689, %v2425
        %v2691 = vadd.f32 %v2690, %v2426
        %v2692 = vadd.f32 %v2691, %v2427
        %v2693 = vadd.f32 %v2692, %v2428
        %v2694 = vadd.f32 %v2693, %v2429
        %v2695 = vadd.f32 %v2694, %v2430
        %v2696 = vadd.f32 %v2695, %v2431
        %v2697 = vadd.f32 %v2696, %v2432
        %v2698 = vadd.f32 %v2697, %v2433
        %v2699 = vadd.f32 %v2698, %v2434
        %v2700 = vadd.f32 %v2699, %v2435
        %v2701 = vadd.f32 %v2700, %v2436
        %v2702 = vadd.f32 %v2701, %v2437
        %v2703 = vadd.f32 %v2702, %v2438
        %v2704 = vadd.f32 %v2703, %v2439
        %v2705 = vadd.f32 %v2704, %v2440
        %v2706 = vadd.f32 %v2705, %v2441
        %v2707 = vadd.f32 %v2706, %v2442
        %v2708 = vadd.f32 %v2707, %v2443
        %v2709 = vadd.f32 %v2708, %v2444
        %v2710 = vadd.f32 %v2709, %v2445
        %v2711 = vadd.f32 %v2710, %v2446
        %v2712 = vadd.f32 %v2711, %v2447
        %v2713 = vadd.f32 %v2712, %v2448
        %v2714 = vadd.f32 %v2713, %v2449
        %v2715 = vadd.f32 %v2714, %v2450
        %v2716 = vadd.f32 %v2715, %v2451
        %v2717 = vadd.f32 %v2716, %v2452
        %v2718 = vadd.f32 %v2717, %v2453
        %v2719 = vadd.f32 %v2718, %v2454
        %v2720 = vrot.slane %v2719, 4
        %v2721 = vadd.f32 %v2719, %v2720
        %v2722 = vrot.slane %v2721, 2
        %v2723 = vadd.f32 %v2721, %v2722
        %v2724 = vrot.slane %v2723, 1
        %v2725 = vadd.f32 %v2723, %v2724
        %v2726 = vadd.f32 %v2455, %v2456
        %v2727 = vadd.f32 %v2726, %v2457
        %v2728 = vadd.f32 %v2727, %v2458
        %v2729 = vadd.f32 %v2728, %v2459
        %v2730 = vadd.f32 %v2729, %v2460
        %v2731 = vadd.f32 %v2730, %v2461
        %v2732 = vadd.f32 %v2731, %v2462
        %v2733 = vadd.f32 %v2732, %v2463
        %v2734 = vadd.f32 %v2733, %v2464
        %v2735 = vadd.f32 %v2734, %v2465
        %v2736 = vadd.f32 %v2735, %v2466
        %v2737 = vadd.f32 %v2736, %v2467
        %v2738 = vadd.f32 %v2737, %v2468
        %v2739 = vadd.f32 %v2738, %v2469
        %v2740 = vadd.f32 %v2739, %v2470
        %v2741 = vadd.f32 %v2740, %v2471
        %v2742 = vadd.f32 %v2741, %v2472
        %v2743 = vadd.f32 %v2742, %v2473
        %v2744 = vadd.f32 %v2743, %v2474
        %v2745 = vadd.f32 %v2744, %v2475
        %v2746 = vadd.f32 %v2745, %v2476
        %v2747 = vadd.f32 %v2746, %v2477
        %v2748 = vadd.f32 %v2747, %v2478
        %v2749 = vadd.f32 %v2748, %v2479
        %v2750 = vadd.f32 %v2749, %v2480
        %v2751 = vadd.f32 %v2750, %v2481
        %v2752 = vadd.f32 %v2751, %v2482
        %v2753 = vadd.f32 %v2752, %v2483
        %v2754 = vadd.f32 %v2753, %v2484
        %v2755 = vadd.f32 %v2754, %v2485
        %v2756 = vadd.f32 %v2755, %v2486
        %v2757 = vrot.slane %v2756, 4
        %v2758 = vadd.f32 %v2756, %v2757
        %v2759 = vrot.slane %v2758, 2
        %v2760 = vadd.f32 %v2758, %v2759
        %v2761 = vrot.slane %v2760, 1
        %v2762 = vadd.f32 %v2760, %v2761
        %v2763 = vadd.f32 %v2487, %v2488
        %v2764 = vadd.f32 %v2763, %v2489
        %v2765 = vadd.f32 %v2764, %v2490
        %v2766 = vadd.f32 %v2765, %v2491
        %v2767 = vadd.f32 %v2766, %v2492
        %v2768 = vadd.f32 %v2767, %v2493
        %v2769 = vadd.f32 %v2768, %v2494
        %v2770 = vadd.f32 %v2769, %v2495
        %v2771 = vadd.f32 %v2770, %v2496
        %v2772 = vadd.f32 %v2771, %v2497
        %v2773 = vadd.f32 %v2772, %v2498
        %v2774 = vadd.f32 %v2773, %v2499
        %v2775 = vadd.f32 %v2774, %v2500
        %v2776 = vadd.f32 %v2775, %v2501
        %v2777 = vadd.f32 %v2776, %v2502
        %v2778 = vadd.f32 %v2777, %v2503
        %v2779 = vadd.f32 %v2778, %v2504
        %v2780 = vadd.f32 %v2779, %v2505
        %v2781 = vadd.f32 %v2780, %v2506
        %v2782 = vadd.f32 %v2781, %v2507
        %v2783 = vadd.f32 %v2782, %v2508
        %v2784 = vadd.f32 %v2783, %v2509
        %v2785 = vadd.f32 %v2784, %v2510
        %v2786 = vadd.f32 %v2785, %v2511
        %v2787 = vadd.f32 %v2786, %v2512
        %v2788 = vadd.f32 %v2787, %v2513
        %v2789 = vadd.f32 %v2788, %v2514
        %v2790 = vadd.f32 %v2789, %v2515
        %v2791 = vadd.f32 %v2790, %v2516
        %v2792 = vadd.f32 %v2791, %v2517
        %v2793 = vadd.f32 %v2792, %v2518
        %v2794 = vrot.slane %v2793, 4
        %v2795 = vadd.f32 %v2793, %v2794
        %v2796 = vrot.slane %v2795, 2
        %v2797 = vadd.f32 %v2795, %v2796
        %v2798 = vrot.slane %v2797, 1
        %v2799 = vadd.f32 %v2797, %v2798
        %v2800 = vadd.f32 %v2519, %v2520
        %v2801 = vadd.f32 %v2800, %v2521
        %v2802 = vadd.f32 %v2801, %v2522
        %v2803 = vadd.f32 %v2802, %v2523
        %v2804 = vadd.f32 %v2803, %v2524
        %v2805 = vadd.f32 %v2804, %v2525
        %v2806 = vadd.f32 %v2805, %v2526
        %v2807 = vadd.f32 %v2806, %v2527
        %v2808 = vadd.f32 %v2807, %v2528
        %v2809 = vadd.f32 %v2808, %v2529
        %v2810 = vadd.f32 %v2809, %v2530
        %v2811 = vadd.f32 %v2810, %v2531
        %v2812 = vadd.f32 %v2811, %v2532
        %v2813 = vadd.f32 %v2812, %v2533
        %v2814 = vadd.f32 %v2813, %v2534
        %v2815 = vadd.f32 %v2814, %v2535
        %v2816 = vadd.f32 %v2815, %v2536
        %v2817 = vadd.f32 %v2816, %v2537
        %v2818 = vadd.f32 %v2817, %v2538
        %v2819 = vadd.f32 %v2818, %v2539
        %v2820 = vadd.f32 %v2819, %v2540
        %v2821 = vadd.f32 %v2820, %v2541
        %v2822 = vadd.f32 %v2821, %v2542
        %v2823 = vadd.f32 %v2822, %v2543
        %v2824 = vadd.f32 %v2823, %v2544
        %v2825 = vadd.f32 %v2824, %v2545
        %v2826 = vadd.f32 %v2825, %v2546
        %v2827 = vadd.f32 %v2826, %v2547
        %v2828 = vadd.f32 %v2827, %v2548
        %v2829 = vadd.f32 %v2828, %v2549
        %v2830 = vadd.f32 %v2829, %v2550
        %v2831 = vrot.slane %v2830, 4
        %v2832 = vadd.f32 %v2830, %v2831
        %v2833 = vrot.slane %v2832, 2
        %v2834 = vadd.f32 %v2832, %v2833
        %v2835 = vrot.slane %v2834, 1
        %v2836 = vadd.f32 %v2834, %v2835
        %v2837 = vadd.f32 %v2551, %v2552
        %v2838 = vadd.f32 %v2837, %v2553
        %v2839 = vadd.f32 %v2838, %v2554
        %v2840 = vadd.f32 %v2839, %v2555
        %v2841 = vadd.f32 %v2840, %v2556
        %v2842 = vadd.f32 %v2841, %v2557
        %v2843 = vadd.f32 %v2842, %v2558
        %v2844 = vadd.f32 %v2843, %v2559
        %v2845 = vadd.f32 %v2844, %v2560
        %v2846 = vadd.f32 %v2845, %v2561
        %v2847 = vadd.f32 %v2846, %v2562
        %v2848 = vadd.f32 %v2847, %v2563
        %v2849 = vadd.f32 %v2848, %v2564
        %v2850 = vadd.f32 %v2849, %v2565
        %v2851 = vadd.f32 %v2850, %v2566
        %v2852 = vadd.f32 %v2851, %v2567
        %v2853 = vadd.f32 %v2852, %v2568
        %v2854 = vadd.f32 %v2853, %v2569
        %v2855 = vadd.f32 %v2854, %v2570
        %v2856 = vadd.f32 %v2855, %v2571
        %v2857 = vadd.f32 %v2856, %v2572
        %v2858 = vadd.f32 %v2857, %v2573
        %v2859 = vadd.f32 %v2858, %v2574
        %v2860 = vadd.f32 %v2859, %v2575
        %v2861 = vadd.f32 %v2860, %v2576
        %v2862 = vadd.f32 %v2861, %v2577
        %v2863 = vadd.f32 %v2862, %v2578
        %v2864 = vadd.f32 %v2863, %v2579
        %v2865 = vadd.f32 %v2864, %v2580
        %v2866 = vadd.f32 %v2865, %v2581
        %v2867 = vadd.f32 %v2866, %v2582
        %v2868 = vrot.slane %v2867, 4
        %v2869 = vadd.f32 %v2867, %v2868
        %v2870 = vrot.slane %v2869, 2
        %v2871 = vadd.f32 %v2869, %v2870
        %v2872 = vrot.slane %v2871, 1
        %v2873 = vadd.f32 %v2871, %v2872
        %v2874 = vadd.f32 %v2583, %v2584
        %v2875 = vadd.f32 %v2874, %v2585
        %v2876 = vadd.f32 %v2875, %v2586
        %v2877 = vadd.f32 %v2876, %v2587
        %v2878 = vadd.f32 %v2877, %v2588
        %v2879 = vadd.f32 %v2878, %v2589
        %v2880 = vadd.f32 %v2879, %v2590
        %v2881 = vadd.f32 %v2880, %v2591
        %v2882 = vadd.f32 %v2881, %v2592
        %v2883 = vadd.f32 %v2882, %v2593
        %v2884 = vadd.f32 %v2883, %v2594
        %v2885 = vadd.f32 %v2884, %v2595
        %v2886 = vadd.f32 %v2885, %v2596
        %v2887 = vadd.f32 %v2886, %v2597
        %v2888 = vadd.f32 %v2887, %v2598
        %v2889 = vadd.f32 %v2888, %v2599
        %v2890 = vadd.f32 %v2889, %v2600
        %v2891 = vadd.f32 %v2890, %v2601
        %v2892 = vadd.f32 %v2891, %v2602
        %v2893 = vadd.f32 %v2892, %v2603
        %v2894 = vadd.f32 %v2893, %v2604
        %v2895 = vadd.f32 %v2894, %v2605
        %v2896 = vadd.f32 %v2895, %v2606
        %v2897 = vadd.f32 %v2896, %v2607
        %v2898 = vadd.f32 %v2897, %v2608
        %v2899 = vadd.f32 %v2898, %v2609
        %v2900 = vadd.f32 %v2899, %v2610
        %v2901 = vadd.f32 %v2900, %v2611
        %v2902 = vadd.f32 %v2901, %v2612
        %v2903 = vadd.f32 %v2902, %v2613
        %v2904 = vadd.f32 %v2903, %v2614
        %v2905 = vrot.slane %v2904, 4
        %v2906 = vadd.f32 %v2904, %v2905
        %v2907 = vrot.slane %v2906, 2
        %v2908 = vadd.f32 %v2906, %v2907
        %v2909 = vrot.slane %v2908, 1
        %v2910 = vadd.f32 %v2908, %v2909
        %v2911 = vrcp.pop 256.0
        %v2912 = vmul.f32 %v2651, %v2911
        %v2913 = vmul.f32 %v2688, %v2911
        %v2914 = vmul.f32 %v2725, %v2911
        %v2915 = vmul.f32 %v2762, %v2911
        %v2916 = vmul.f32 %v2799, %v2911
        %v2917 = vmul.f32 %v2836, %v2911
        %v2918 = vmul.f32 %v2873, %v2911
        %v2919 = vmul.f32 %v2910, %v2911
        %vm2928 = vcmask 1041409
        %v2929 = vsel %vm2928, %v2913, %v2912
        %vm2930 = vcmask 1042434
        %v2931 = vsel %vm2930, %v2914, %v2929
        %vm2932 = vcmask 1043459
        %v2933 = vsel %vm2932, %v2915, %v2931
        %vm2934 = vcmask 1044484
        %v2935 = vsel %vm2934, %v2916, %v2933
        %vm2936 = vcmask 1045509
        %v2937 = vsel %vm2936, %v2917, %v2935
        %vm2938 = vcmask 1046534
        %v2939 = vsel %vm2938, %v2918, %v2937
        %vm2940 = vcmask 1047559
        %v2941 = vsel %vm2940, %v2919, %v2939
        %2943 = vst [vmem:[%s204] sm:$0xff] %v2941
        %s2944 = sand.u32 %s97, 1
        %s2945 = scalar_lea.sflag [#allocation4], %s2944
        %s2946 = sand.u32 %s97, 1
        %s2947 = smul.addr %s2946, 8
        %s2948 = scalar_lea.vmem [#allocation7], %s2947
        // Predicated region
        $region41: #{tpu_custom_call.1} parent=31 // pred_check
          %p2949 = pneg %p107
        $region42: #{tpu_custom_call.1} parent=31 // pred_check_branch
          %2951 = sbr.rel (%p2949) target = $region44
        $region43: #{tpu_custom_call.1} parent=31 // pred_region
          %s2953 = ssub.s32 128, 128
          %2954 = vsyncadd %s2945, %s2953
          %s2955 = smul.addr %s21, 128
          %s2956 = scalar_lea.hbm %s3, %s2955
          %s2958 = sshll.u32 %s2948, 4
          %s2959 = int_to_ptr.vmem [resolvable:$true] %s2958
          %2961 = dma.vmem_to_hbm [thread:$0]  %s2959, 128, %s2956, %s2945
        $region44: #{tpu_custom_call.1} parent=31 // pred_fallthru
          _
      $region32: #{tpu_custom_call.1} parent=5 // pred_fallthru
        _
      %p2962 = scmp.le.s32.totalorder 2, %s16
      // Predicated region
      $region45: #{tpu_custom_call.1} parent=5 // pred_check
        %p2963 = pneg %p2962
      $region46: #{tpu_custom_call.1} parent=5 // pred_check_branch
        %2965 = sbr.rel (%p2963) target = $region48
      $region47: #{tpu_custom_call.1} parent=5 // pred_region
        %s2966 = ssub.s32 %s16, 2
        // Predicated region
        $region49: #{tpu_custom_call.1} parent=47 // pred_check
          %p2967 = pneg %p113
        $region50: #{tpu_custom_call.1} parent=47 // pred_check_branch
          %2969 = sbr.rel (%p2967) target = $region52
        $region51: #{tpu_custom_call.1} parent=47 // pred_region
          %s2970 = sand.u32 %s98, 1
          %s2971 = scalar_lea.sflag [#allocation4], %s2970
          %s2972 = sand.u32 %s98, 1
          %s2973 = smul.addr %s2972, 8
          %s2974 = scalar_lea.vmem [#allocation7], %s2973
          %2975 = dma.done %s2971, 128
        $region52: #{tpu_custom_call.1} parent=47 // pred_fallthru
          _
      $region48: #{tpu_custom_call.1} parent=5 // pred_fallthru
        _
    $region6: #{tpu_custom_call.1} parent=1 // loop_footer
      %s20 = sadd.s32 1, %s16
    $region7: #{tpu_custom_call.1} parent=1 // loop_footer_branch
      %15 = sbr.rel target = $region3
    $region8: #{tpu_custom_call.1} parent=1 // loop_exit
      _
    %2976 = vsyncpa [#allocation3], 1
    %s2977 = scalar_lea.sflag [#allocation3], 1
    %2978 = vsyncpa %s2977, 1
    %2979 = vsyncpa [#allocation6], 1
    %2980 = vsyncpa [#allocation4], 1
    %s2981 = scalar_lea.sflag [#allocation4], 1
    %2982 = vsyncpa %s2981, 1

</llo_original>
